<compile_context>
chip_gen: v7x
topology: tpu7x:2x2x1
jax: 0.10.0
libtpu: 0.0.40
codegen_flags: <defaults>
</compile_context>

<pallas_src>
import functools

import jax
import jax.numpy as jnp
from jax.experimental import pallas as pl
from jax.experimental.pallas import tpu as pltpu


# ----------------------------- fused kernel ---------------------------------


def _gmvae_kernel(xm_ref, eps_ref, cat_off_ref,
                  # qy_graph weights
                  wq1_ref, bq1_ref, wq2_ref, bq2_ref, wq3_ref, bq3_ref,
                  # qz_graph / decoder weights
                  wxy_x_ref, whxy_ref, bhxy_ref,
                  whz_mu_ref, bhz_mu_ref, whz_lv_ref, bhz_lv_ref,
                  wzh_ref, bzh_ref, whzh_ref, bhzh_ref,
                  wobs_ref, bobs_ref, wmsk_ref, bmsk_ref,
                  # outputs
                  qy_out_ref, cat_out_ref,
                  *, r_cat):
    f32 = jnp.float32
    xm = xm_ref[...]                                   # (B, d_wm)

    # ---------------- qy_graph (runs once, shares the xm VMEM tile) ----------
    h = jnp.maximum(
        jnp.dot(xm, wq1_ref[...], preferred_element_type=f32) + bq1_ref[...], 0.0)
    h = jnp.maximum(
        jnp.dot(h, wq2_ref[...], preferred_element_type=f32) + bq2_ref[...], 0.0)
    logit = jnp.dot(h, wq3_ref[...], preferred_element_type=f32) + bq3_ref[...]
    mx = jnp.max(logit, axis=1, keepdims=True)
    e = jnp.exp(logit - mx)
    qy = e * pl.reciprocal(jnp.sum(e, axis=1, keepdims=True), approx=True)
    qy_out_ref[...] = jnp.concatenate([logit, qy], axis=1)   # (B, 2*r_cat)

    # -------- qz_graph + decoder for ALL categories, folded into the batch ---
    # cat([xm, y]) @ W_xy == xm @ W_x + W_y[i]; W_y[i] + b is precomputed per
    # row in cat_off_ref (category-major: row k*B + b  <->  category k).
    hxy_base = jnp.dot(xm, wxy_x_ref[...], preferred_element_type=f32)   # (B, h)
    hxy = jnp.maximum(
        jnp.concatenate([hxy_base] * r_cat, axis=0) + cat_off_ref[...], 0.0)
    h1 = jnp.maximum(
        jnp.dot(hxy, whxy_ref[...], preferred_element_type=f32) + bhxy_ref[...], 0.0)

    z_mu = jnp.dot(h1, whz_mu_ref[...], preferred_element_type=f32) + bhz_mu_ref[...]
    z_lv = jnp.clip(
        jnp.dot(h1, whz_lv_ref[...], preferred_element_type=f32) + bhz_lv_ref[...],
        -15.0, 15.0)
    z = z_mu + eps_ref[...] * jnp.exp(0.5 * z_lv)      # exp(0.5*lv) == sqrt(exp(lv))

    hz = jnp.maximum(
        jnp.dot(z, wzh_ref[...], preferred_element_type=f32) + bzh_ref[...], 0.0)
    h2 = jnp.maximum(
        jnp.dot(hz, whzh_ref[...], preferred_element_type=f32) + bhzh_ref[...], 0.0)
    # mnist=False path: observed reconstruction stays as raw logits
    x_obs = jnp.dot(h2, wobs_ref[...], preferred_element_type=f32) + bobs_ref[...]
    x_msk = jax.nn.sigmoid(
        jnp.dot(h2, wmsk_ref[...], preferred_element_type=f32) + bmsk_ref[...])

    # single lane-dense packed output: [z | z_mu | z_logvar | x_obs | x_msk]
    cat_out_ref[...] = jnp.concatenate([z, z_mu, z_lv, x_obs, x_msk], axis=1)


# --------------------------- python wrapper ----------------------------------


def gmvae_forward_pallas(x, m_mask, params, eps, *, input_dim, r_cat_dim, z_dim, h_dim):
    xm = jnp.concatenate([x, m_mask], axis=1)          # (B, 2*input_dim)
    B, d_wm = xm.shape

    # ---- plain-JAX glue: weight splits / category-offset table / priors ----
    W_xy_x, W_xy_y = params["W_xy_h"][:d_wm], params["W_xy_h"][d_wm:]
    # per-row (category-major) offset:  W_xy_y[k] + b_xy, repeated B times
    cat_off = jnp.repeat(W_xy_y + params["b_xy_h"], B, axis=0)      # (r_cat*B, h)

    W_hz_mu, W_hz_lv = params["W_h_z"][:, :z_dim], params["W_h_z"][:, z_dim:]
    b_hz_mu, b_hz_lv = params["b_h_z"][:, :z_dim], params["b_h_z"][:, z_dim:]
    W_obs, W_msk = params["W_h_xm"][:, :input_dim], params["W_h_xm"][:, input_dim:]
    b_obs, b_msk = params["b_h_xm"][:, :input_dim], params["b_h_xm"][:, input_dim:]

    # priors are x/B-independent row selects of fc_y_z -> computed outside kernel
    W_yz_mu, W_yz_lv = params["W_y_z"][:, :z_dim], params["W_y_z"][:, z_dim:]
    b_yz_mu, b_yz_lv = params["b_y_z"][:, :z_dim], params["b_y_z"][:, z_dim:]
    zm_prior = jnp.broadcast_to((W_yz_mu + b_yz_mu)[:, None, :],
                                (r_cat_dim, B, z_dim))
    zv_prior = jnp.broadcast_to(
        jnp.clip(W_yz_lv + b_yz_lv, -15.0, 15.0)[:, None, :],
        (r_cat_dim, B, z_dim))

    eps_big = eps.reshape(r_cat_dim * B, z_dim)        # category-major rows

    args = (xm, eps_big, cat_off,
            params["W_xobs_h"], params["b_xobs_h"],
            params["W_hxobs_h"], params["b_hxobs_h"],
            params["W_h_qyl"], params["b_h_qyl"],
            W_xy_x,
            params["W_hxy_h"], params["b_hxy_h"],
            W_hz_mu, b_hz_mu, W_hz_lv, b_hz_lv,
            params["W_z_h"], params["b_z_h"],
            params["W_hz_h"], params["b_hz_h"],
            W_obs, b_obs, W_msk, b_msk)

    cat_feat = 3 * z_dim + 2 * input_dim
    kernel = functools.partial(_gmvae_kernel, r_cat=r_cat_dim)

    # single invocation, no grid: everything fits trivially in VMEM at these
    # shapes; default BlockSpecs stage whole arrays into VMEM once.
    qy_packed, cat_packed = pl.pallas_call(
        kernel,
        out_shape=(jax.ShapeDtypeStruct((B, 2 * r_cat_dim), jnp.float32),
                   jax.ShapeDtypeStruct((r_cat_dim * B, cat_feat), jnp.float32)),
    )(*args)

    qy_logit = qy_packed[:, :r_cat_dim]
    qy = qy_packed[:, r_cat_dim:]

    cat3 = cat_packed.reshape(r_cat_dim, B, cat_feat)
    z = cat3[..., 0:z_dim]
    zm = cat3[..., z_dim:2 * z_dim]
    zv = cat3[..., 2 * z_dim:3 * z_dim]
    xobs = cat3[..., 3 * z_dim:3 * z_dim + input_dim]
    m_sim_miss = cat3[..., 3 * z_dim + input_dim:]

    recon = {"xobs": xobs, "xmis": None, "M_sim_miss": m_sim_miss}
    variational_params = {
        "xmis_mu": None, "xmis_logvar": None,
        "xmis_mu_prior": None, "xmis_logvar_prior": None,
        "z_mu": zm, "z_logvar": zv,
        "z_mu_prior": zm_prior, "z_logvar_prior": zv_prior,
        "qy_logit": qy_logit, "qy": qy,
    }
    latent_samples = {"z": z, "xmis": None}
    return recon, variational_params, latent_samples


# --------------------------- reference (plain JAX) ---------------------------


def gmvae_forward_ref(x, m_mask, params, eps, *, input_dim, r_cat_dim, z_dim):
    relu = jax.nn.relu
    xm = jnp.concatenate([x, m_mask], axis=1)
    B = x.shape[0]
    h = relu(xm @ params["W_xobs_h"] + params["b_xobs_h"])
    h = relu(h @ params["W_hxobs_h"] + params["b_hxobs_h"])
    qy_logit = h @ params["W_h_qyl"] + params["b_h_qyl"]
    qy = jax.nn.softmax(qy_logit, axis=1)

    eye = jnp.eye(r_cat_dim, dtype=jnp.float32)
    zs, zms, zvs, zmps, zvps, xobss, msks = ([] for _ in range(7))
    for i in range(r_cat_dim):
        y = jnp.zeros((B, r_cat_dim), jnp.float32) + eye[i]
        xy = jnp.concatenate([xm, y], axis=1)
        hxy = relu(xy @ params["W_xy_h"] + params["b_xy_h"])
        h1 = relu(hxy @ params["W_hxy_h"] + params["b_hxy_h"])
        zp = h1 @ params["W_h_z"] + params["b_h_z"]
        z_mu, z_lv = zp[:, :z_dim], jnp.clip(zp[:, z_dim:], -15.0, 15.0)
        z = z_mu + eps[i] * jnp.sqrt(jnp.exp(z_lv))
        zpr = y @ params["W_y_z"] + params["b_y_z"]
        zm_p, zv_p = zpr[:, :z_dim], jnp.clip(zpr[:, z_dim:], -15.0, 15.0)
        hz = relu(z @ params["W_z_h"] + params["b_z_h"])
        h2 = relu(hz @ params["W_hz_h"] + params["b_hz_h"])
        xr = h2 @ params["W_h_xm"] + params["b_h_xm"]
        zs.append(z); zms.append(z_mu); zvs.append(z_lv)
        zmps.append(zm_p); zvps.append(zv_p)
        xobss.append(xr[:, :input_dim])
        msks.append(jax.nn.sigmoid(xr[:, input_dim:]))
    return (qy_logit, qy, jnp.stack(zs), jnp.stack(zms), jnp.stack(zvs),
            jnp.stack(zmps), jnp.stack(zvps), jnp.stack(xobss), jnp.stack(msks))


# ------------------------------- setup ---------------------------------------


def init_params(key, *, input_dim, r_cat_dim, z_dim, h_dim, miss=1):
    d_wm = input_dim + miss * input_dim

    def lin(k, fan_in, fan_out):
        k1, k2 = jax.random.split(k)
        w = jax.random.normal(k1, (fan_in, fan_out), jnp.float32) * 0.1
        b = jax.random.normal(k2, (1, fan_out), jnp.float32) * 0.1
        return w, b

    keys = jax.random.split(key, 10)
    p = {}
    p["W_xobs_h"], p["b_xobs_h"] = lin(keys[0], d_wm, h_dim)
    p["W_hxobs_h"], p["b_hxobs_h"] = lin(keys[1], h_dim, h_dim)
    p["W_h_qyl"], p["b_h_qyl"] = lin(keys[2], h_dim, r_cat_dim)
    p["W_xy_h"], p["b_xy_h"] = lin(keys[3], d_wm + r_cat_dim, h_dim)
    p["W_hxy_h"], p["b_hxy_h"] = lin(keys[4], h_dim, h_dim)
    p["W_h_z"], p["b_h_z"] = lin(keys[5], h_dim, 2 * z_dim)
    p["W_y_z"], p["b_y_z"] = lin(keys[6], r_cat_dim, 2 * z_dim)
    p["W_z_h"], p["b_z_h"] = lin(keys[7], z_dim, h_dim)
    p["W_hz_h"], p["b_hz_h"] = lin(keys[8], h_dim, h_dim)
    p["W_h_xm"], p["b_h_xm"] = lin(keys[9], h_dim, d_wm)
    return p


if __name__ == "__main__":
    # small shapes consistent with the module (miss_mask_training=1, mnist=False)
    B, input_dim, r_cat_dim, z_dim, h_dim = 8, 16, 4, 8, 32

    root = jax.random.PRNGKey(0)
    k_param, k_x, k_m, k_eps = jax.random.split(root, 4)

    params = init_params(k_param, input_dim=input_dim, r_cat_dim=r_cat_dim,
                         z_dim=z_dim, h_dim=h_dim, miss=1)
    x = jax.random.normal(k_x, (B, input_dim), jnp.float32)
    m_mask = (jax.random.uniform(k_m, (B, input_dim)) > 0.3).astype(jnp.float32)
    # TODO(synk): only the test_mode=False path (eps shaped (B, z_dim) per
    # category) is implemented; the L-sample test_mode=True branch is omitted.
    eps = jax.random.normal(k_eps, (r_cat_dim, B, z_dim), jnp.float32)

    fwd = functools.partial(gmvae_forward_pallas, input_dim=input_dim,
                            r_cat_dim=r_cat_dim, z_dim=z_dim, h_dim=h_dim)
    recon, var_params, latents = jax.jit(fwd)(x, m_mask, params, eps)
    jax.block_until_ready(latents["z"])

    # correctness check against a plain-JAX reference
    ref = gmvae_forward_ref(x, m_mask, params, eps, input_dim=input_dim,
                            r_cat_dim=r_cat_dim, z_dim=z_dim)
    got = (var_params["qy_logit"], var_params["qy"], latents["z"],
           var_params["z_mu"], var_params["z_logvar"],
           var_params["z_mu_prior"], var_params["z_logvar_prior"],
           recon["xobs"], recon["M_sim_miss"])
    for a, b in zip(got, ref):
        assert a.shape == b.shape, (a.shape, b.shape)
        assert jnp.allclose(a, b, atol=2e-3, rtol=2e-3), float(jnp.max(jnp.abs(a - b)))

    print("KERNEL_OK")
</pallas_src>

<mosaic_0001>
module attributes {stable_mosaic.version = 11 : i64} {
  func.func @_gmvae_kernel(%arg0: memref<8x32xf32, #tpu.memory_space<vmem>>, %arg1: memref<32x8xf32, #tpu.memory_space<vmem>>, %arg2: memref<32x32xf32, #tpu.memory_space<vmem>>, %arg3: memref<32x32xf32, #tpu.memory_space<vmem>>, %arg4: memref<1x32xf32, #tpu.memory_space<vmem>>, %arg5: memref<32x32xf32, #tpu.memory_space<vmem>>, %arg6: memref<1x32xf32, #tpu.memory_space<vmem>>, %arg7: memref<32x4xf32, #tpu.memory_space<vmem>>, %arg8: memref<1x4xf32, #tpu.memory_space<vmem>>, %arg9: memref<32x32xf32, #tpu.memory_space<vmem>>, %arg10: memref<32x32xf32, #tpu.memory_space<vmem>>, %arg11: memref<1x32xf32, #tpu.memory_space<vmem>>, %arg12: memref<32x8xf32, #tpu.memory_space<vmem>>, %arg13: memref<1x8xf32, #tpu.memory_space<vmem>>, %arg14: memref<32x8xf32, #tpu.memory_space<vmem>>, %arg15: memref<1x8xf32, #tpu.memory_space<vmem>>, %arg16: memref<8x32xf32, #tpu.memory_space<vmem>>, %arg17: memref<1x32xf32, #tpu.memory_space<vmem>>, %arg18: memref<32x32xf32, #tpu.memory_space<vmem>>, %arg19: memref<1x32xf32, #tpu.memory_space<vmem>>, %arg20: memref<32x16xf32, #tpu.memory_space<vmem>>, %arg21: memref<1x16xf32, #tpu.memory_space<vmem>>, %arg22: memref<32x16xf32, #tpu.memory_space<vmem>>, %arg23: memref<1x16xf32, #tpu.memory_space<vmem>>, %arg24: memref<8x8xf32, #tpu.memory_space<vmem>>, %arg25: memref<32x56xf32, #tpu.memory_space<vmem>>) attributes {dimension_semantics = [], scalar_prefetch = 0 : i64, scratch_operands = 0 : i64, tpu.core_type = #tpu.core_type<tc>} {
    %c0 = arith.constant 0 : index
    %c0_0 = arith.constant 0 : index
    %0 = vector.load %arg0[%c0, %c0_0] : memref<8x32xf32, #tpu.memory_space<vmem>>, vector<8x32xf32>
    %c0_1 = arith.constant 0 : index
    %c0_2 = arith.constant 0 : index
    %1 = vector.load %arg3[%c0_1, %c0_2] : memref<32x32xf32, #tpu.memory_space<vmem>>, vector<32x32xf32>
    %cst = arith.constant dense<0.000000e+00> : vector<8x32xf32>
    %2 = tpu.matmul %0, %1, %cst {dimension_numbers = #tpu.dot_dimension_numbers<[1], [0], [0], [1], [0, 0, 1, 1], [], []>} : vector<8x32xf32>, vector<32x32xf32>, vector<8x32xf32> -> vector<8x32xf32>
    %c0_3 = arith.constant 0 : index
    %c0_4 = arith.constant 0 : index
    %3 = vector.load %arg4[%c0_3, %c0_4] : memref<1x32xf32, #tpu.memory_space<vmem>>, vector<1x32xf32>
    %4 = vector.broadcast %3 : vector<1x32xf32> to vector<8x32xf32>
    %5 = arith.addf %2, %4 : vector<8x32xf32>
    %cst_5 = arith.constant 0.000000e+00 : f32
    %6 = vector.broadcast %cst_5 : f32 to vector<8x32xf32>
    %7 = arith.maximumf %5, %6 : vector<8x32xf32>
    %c0_6 = arith.constant 0 : index
    %c0_7 = arith.constant 0 : index
    %8 = vector.load %arg5[%c0_6, %c0_7] : memref<32x32xf32, #tpu.memory_space<vmem>>, vector<32x32xf32>
    %cst_8 = arith.constant dense<0.000000e+00> : vector<8x32xf32>
    %9 = tpu.matmul %7, %8, %cst_8 {dimension_numbers = #tpu.dot_dimension_numbers<[1], [0], [0], [1], [0, 0, 1, 1], [], []>} : vector<8x32xf32>, vector<32x32xf32>, vector<8x32xf32> -> vector<8x32xf32>
    %c0_9 = arith.constant 0 : index
    %c0_10 = arith.constant 0 : index
    %10 = vector.load %arg6[%c0_9, %c0_10] : memref<1x32xf32, #tpu.memory_space<vmem>>, vector<1x32xf32>
    %11 = vector.broadcast %10 : vector<1x32xf32> to vector<8x32xf32>
    %12 = arith.addf %9, %11 : vector<8x32xf32>
    %cst_11 = arith.constant 0.000000e+00 : f32
    %13 = vector.broadcast %cst_11 : f32 to vector<8x32xf32>
    %14 = arith.maximumf %12, %13 : vector<8x32xf32>
    %c0_12 = arith.constant 0 : index
    %c0_13 = arith.constant 0 : index
    %15 = vector.load %arg7[%c0_12, %c0_13] : memref<32x4xf32, #tpu.memory_space<vmem>>, vector<32x4xf32>
    %cst_14 = arith.constant dense<0.000000e+00> : vector<8x4xf32>
    %16 = tpu.matmul %14, %15, %cst_14 {dimension_numbers = #tpu.dot_dimension_numbers<[1], [0], [0], [1], [0, 0, 1, 1], [], []>} : vector<8x32xf32>, vector<32x4xf32>, vector<8x4xf32> -> vector<8x4xf32>
    %c0_15 = arith.constant 0 : index
    %c0_16 = arith.constant 0 : index
    %17 = vector.load %arg8[%c0_15, %c0_16] : memref<1x4xf32, #tpu.memory_space<vmem>>, vector<1x4xf32>
    %18 = vector.broadcast %17 : vector<1x4xf32> to vector<8x4xf32>
    %19 = arith.addf %16, %18 : vector<8x4xf32>
    %cst_17 = arith.constant dense<0xFF800000> : vector<8xf32>
    %20 = vector.multi_reduction <maximumf>, %19, %cst_17 [1] : vector<8x4xf32> to vector<8xf32>
    %21 = vector.shape_cast %20 : vector<8xf32> to vector<8x1xf32>
    %22 = vector.broadcast %21 : vector<8x1xf32> to vector<8x4xf32>
    %23 = arith.subf %19, %22 : vector<8x4xf32>
    %24 = math.exp %23 : vector<8x4xf32>
    %cst_18 = arith.constant dense<0.000000e+00> : vector<8xf32>
    %25 = vector.multi_reduction <add>, %24, %cst_18 [1] : vector<8x4xf32> to vector<8xf32>
    %26 = vector.shape_cast %25 : vector<8xf32> to vector<8x1xf32>
    %27 = tpu.reciprocal %26 {approx = true} : vector<8x1xf32> -> vector<8x1xf32>
    %28 = vector.broadcast %27 : vector<8x1xf32> to vector<8x4xf32>
    %29 = arith.mulf %24, %28 : vector<8x4xf32>
    %30 = tpu.concatenate %19, %29 in 1 : vector<8x4xf32>, vector<8x4xf32> -> vector<8x8xf32>
    %c0_19 = arith.constant 0 : index
    %c0_20 = arith.constant 0 : index
    %31 = vector.load %arg24[%c0_19, %c0_20] : memref<8x8xf32, #tpu.memory_space<vmem>>, vector<8x8xf32>
    tpu.vector_store %arg24[%c0_19, %c0_20], %30 {strides = array<i32>} : memref<8x8xf32, #tpu.memory_space<vmem>>, vector<8x8xf32>,
    %c0_21 = arith.constant 0 : index
    %c0_22 = arith.constant 0 : index
    %32 = vector.load %arg9[%c0_21, %c0_22] : memref<32x32xf32, #tpu.memory_space<vmem>>, vector<32x32xf32>
    %cst_23 = arith.constant dense<0.000000e+00> : vector<8x32xf32>
    %33 = tpu.matmul %0, %32, %cst_23 {dimension_numbers = #tpu.dot_dimension_numbers<[1], [0], [0], [1], [0, 0, 1, 1], [], []>} : vector<8x32xf32>, vector<32x32xf32>, vector<8x32xf32> -> vector<8x32xf32>
    %34 = tpu.concatenate %33, %33, %33, %33 in 0 : vector<8x32xf32>, vector<8x32xf32>, vector<8x32xf32>, vector<8x32xf32> -> vector<32x32xf32>
    %c0_24 = arith.constant 0 : index
    %c0_25 = arith.constant 0 : index
    %35 = vector.load %arg2[%c0_24, %c0_25] : memref<32x32xf32, #tpu.memory_space<vmem>>, vector<32x32xf32>
    %36 = arith.addf %34, %35 : vector<32x32xf32>
    %cst_26 = arith.constant 0.000000e+00 : f32
    %37 = vector.broadcast %cst_26 : f32 to vector<32x32xf32>
    %38 = arith.maximumf %36, %37 : vector<32x32xf32>
    %c0_27 = arith.constant 0 : index
    %c0_28 = arith.constant 0 : index
    %39 = vector.load %arg10[%c0_27, %c0_28] : memref<32x32xf32, #tpu.memory_space<vmem>>, vector<32x32xf32>
    %cst_29 = arith.constant dense<0.000000e+00> : vector<32x32xf32>
    %40 = tpu.matmul %38, %39, %cst_29 {dimension_numbers = #tpu.dot_dimension_numbers<[1], [0], [0], [1], [0, 0, 1, 1], [], []>} : vector<32x32xf32>, vector<32x32xf32>, vector<32x32xf32> -> vector<32x32xf32>
    %c0_30 = arith.constant 0 : index
    %c0_31 = arith.constant 0 : index
    %41 = vector.load %arg11[%c0_30, %c0_31] : memref<1x32xf32, #tpu.memory_space<vmem>>, vector<1x32xf32>
    %42 = vector.broadcast %41 : vector<1x32xf32> to vector<32x32xf32>
    %43 = arith.addf %40, %42 : vector<32x32xf32>
    %cst_32 = arith.constant 0.000000e+00 : f32
    %44 = vector.broadcast %cst_32 : f32 to vector<32x32xf32>
    %45 = arith.maximumf %43, %44 : vector<32x32xf32>
    %c0_33 = arith.constant 0 : index
    %c0_34 = arith.constant 0 : index
    %46 = vector.load %arg12[%c0_33, %c0_34] : memref<32x8xf32, #tpu.memory_space<vmem>>, vector<32x8xf32>
    %cst_35 = arith.constant dense<0.000000e+00> : vector<32x8xf32>
    %47 = tpu.matmul %45, %46, %cst_35 {dimension_numbers = #tpu.dot_dimension_numbers<[1], [0], [0], [1], [0, 0, 1, 1], [], []>} : vector<32x32xf32>, vector<32x8xf32>, vector<32x8xf32> -> vector<32x8xf32>
    %c0_36 = arith.constant 0 : index
    %c0_37 = arith.constant 0 : index
    %48 = vector.load %arg13[%c0_36, %c0_37] : memref<1x8xf32, #tpu.memory_space<vmem>>, vector<1x8xf32>
    %49 = vector.broadcast %48 : vector<1x8xf32> to vector<32x8xf32>
    %50 = arith.addf %47, %49 : vector<32x8xf32>
    %c0_38 = arith.constant 0 : index
    %c0_39 = arith.constant 0 : index
    %51 = vector.load %arg14[%c0_38, %c0_39] : memref<32x8xf32, #tpu.memory_space<vmem>>, vector<32x8xf32>
    %cst_40 = arith.constant dense<0.000000e+00> : vector<32x8xf32>
    %52 = tpu.matmul %45, %51, %cst_40 {dimension_numbers = #tpu.dot_dimension_numbers<[1], [0], [0], [1], [0, 0, 1, 1], [], []>} : vector<32x32xf32>, vector<32x8xf32>, vector<32x8xf32> -> vector<32x8xf32>
    %c0_41 = arith.constant 0 : index
    %c0_42 = arith.constant 0 : index
    %53 = vector.load %arg15[%c0_41, %c0_42] : memref<1x8xf32, #tpu.memory_space<vmem>>, vector<1x8xf32>
    %54 = vector.broadcast %53 : vector<1x8xf32> to vector<32x8xf32>
    %55 = arith.addf %52, %54 : vector<32x8xf32>
    %cst_43 = arith.constant -1.500000e+01 : f32
    %cst_44 = arith.constant 1.500000e+01 : f32
    %56 = vector.broadcast %cst_43 : f32 to vector<32x8xf32>
    %57 = arith.maximumf %56, %55 : vector<32x8xf32>
    %58 = vector.broadcast %cst_44 : f32 to vector<32x8xf32>
    %59 = arith.minimumf %58, %57 : vector<32x8xf32>
    %c0_45 = arith.constant 0 : index
    %c0_46 = arith.constant 0 : index
    %60 = vector.load %arg1[%c0_45, %c0_46] : memref<32x8xf32, #tpu.memory_space<vmem>>, vector<32x8xf32>
    %cst_47 = arith.constant 5.000000e-01 : f32
    %61 = vector.broadcast %cst_47 : f32 to vector<32x8xf32>
    %62 = arith.mulf %61, %59 : vector<32x8xf32>
    %63 = math.exp %62 : vector<32x8xf32>
    %64 = arith.mulf %60, %63 : vector<32x8xf32>
    %65 = arith.addf %50, %64 : vector<32x8xf32>
    %c0_48 = arith.constant 0 : index
    %c0_49 = arith.constant 0 : index
    %66 = vector.load %arg16[%c0_48, %c0_49] : memref<8x32xf32, #tpu.memory_space<vmem>>, vector<8x32xf32>
    %cst_50 = arith.constant dense<0.000000e+00> : vector<32x32xf32>
    %67 = tpu.matmul %65, %66, %cst_50 {dimension_numbers = #tpu.dot_dimension_numbers<[1], [0], [0], [1], [0, 0, 1, 1], [], []>} : vector<32x8xf32>, vector<8x32xf32>, vector<32x32xf32> -> vector<32x32xf32>
    %c0_51 = arith.constant 0 : index
    %c0_52 = arith.constant 0 : index
    %68 = vector.load %arg17[%c0_51, %c0_52] : memref<1x32xf32, #tpu.memory_space<vmem>>, vector<1x32xf32>
    %69 = vector.broadcast %68 : vector<1x32xf32> to vector<32x32xf32>
    %70 = arith.addf %67, %69 : vector<32x32xf32>
    %cst_53 = arith.constant 0.000000e+00 : f32
    %71 = vector.broadcast %cst_53 : f32 to vector<32x32xf32>
    %72 = arith.maximumf %70, %71 : vector<32x32xf32>
    %c0_54 = arith.constant 0 : index
    %c0_55 = arith.constant 0 : index
    %73 = vector.load %arg18[%c0_54, %c0_55] : memref<32x32xf32, #tpu.memory_space<vmem>>, vector<32x32xf32>
    %cst_56 = arith.constant dense<0.000000e+00> : vector<32x32xf32>
    %74 = tpu.matmul %72, %73, %cst_56 {dimension_numbers = #tpu.dot_dimension_numbers<[1], [0], [0], [1], [0, 0, 1, 1], [], []>} : vector<32x32xf32>, vector<32x32xf32>, vector<32x32xf32> -> vector<32x32xf32>
    %c0_57 = arith.constant 0 : index
    %c0_58 = arith.constant 0 : index
    %75 = vector.load %arg19[%c0_57, %c0_58] : memref<1x32xf32, #tpu.memory_space<vmem>>, vector<1x32xf32>
    %76 = vector.broadcast %75 : vector<1x32xf32> to vector<32x32xf32>
    %77 = arith.addf %74, %76 : vector<32x32xf32>
    %cst_59 = arith.constant 0.000000e+00 : f32
    %78 = vector.broadcast %cst_59 : f32 to vector<32x32xf32>
    %79 = arith.maximumf %77, %78 : vector<32x32xf32>
    %c0_60 = arith.constant 0 : index
    %c0_61 = arith.constant 0 : index
    %80 = vector.load %arg20[%c0_60, %c0_61] : memref<32x16xf32, #tpu.memory_space<vmem>>, vector<32x16xf32>
    %cst_62 = arith.constant dense<0.000000e+00> : vector<32x16xf32>
    %81 = tpu.matmul %79, %80, %cst_62 {dimension_numbers = #tpu.dot_dimension_numbers<[1], [0], [0], [1], [0, 0, 1, 1], [], []>} : vector<32x32xf32>, vector<32x16xf32>, vector<32x16xf32> -> vector<32x16xf32>
    %c0_63 = arith.constant 0 : index
    %c0_64 = arith.constant 0 : index
    %82 = vector.load %arg21[%c0_63, %c0_64] : memref<1x16xf32, #tpu.memory_space<vmem>>, vector<1x16xf32>
    %83 = vector.broadcast %82 : vector<1x16xf32> to vector<32x16xf32>
    %84 = arith.addf %81, %83 : vector<32x16xf32>
    %c0_65 = arith.constant 0 : index
    %c0_66 = arith.constant 0 : index
    %85 = vector.load %arg22[%c0_65, %c0_66] : memref<32x16xf32, #tpu.memory_space<vmem>>, vector<32x16xf32>
    %cst_67 = arith.constant dense<0.000000e+00> : vector<32x16xf32>
    %86 = tpu.matmul %79, %85, %cst_67 {dimension_numbers = #tpu.dot_dimension_numbers<[1], [0], [0], [1], [0, 0, 1, 1], [], []>} : vector<32x32xf32>, vector<32x16xf32>, vector<32x16xf32> -> vector<32x16xf32>
    %c0_68 = arith.constant 0 : index
    %c0_69 = arith.constant 0 : index
    %87 = vector.load %arg23[%c0_68, %c0_69] : memref<1x16xf32, #tpu.memory_space<vmem>>, vector<1x16xf32>
    %88 = vector.broadcast %87 : vector<1x16xf32> to vector<32x16xf32>
    %89 = arith.addf %86, %88 : vector<32x16xf32>
    %90 = arith.negf %89 : vector<32x16xf32>
    %91 = math.exp %90 : vector<32x16xf32>
    %cst_70 = arith.constant 1.000000e+00 : f32
    %92 = vector.broadcast %cst_70 : f32 to vector<32x16xf32>
    %93 = arith.addf %92, %91 : vector<32x16xf32>
    %94 = arith.divf %92, %93 : vector<32x16xf32>
    %95 = tpu.concatenate %65, %50, %59, %84, %94 in 1 : vector<32x8xf32>, vector<32x8xf32>, vector<32x8xf32>, vector<32x16xf32>, vector<32x16xf32> -> vector<32x56xf32>
    %c0_71 = arith.constant 0 : index
    %c0_72 = arith.constant 0 : index
    %96 = vector.load %arg25[%c0_71, %c0_72] : memref<32x56xf32, #tpu.memory_space<vmem>>, vector<32x56xf32>
    tpu.vector_store %arg25[%c0_71, %c0_72], %95 {strides = array<i32>} : memref<32x56xf32, #tpu.memory_space<vmem>>, vector<32x56xf32>,
    return
  }
}

</mosaic_0001>

<llo_original>
// kernel: gmvae_forward_pallas.1
$region0: #{gmvae_forward_pallas.1}
  #allocation0 [shape = 'u32[]', space=smem, size = 0x4, offset = 0x4, fixed_abs, tag = 'smem constant byte address 0x4 - core index']
  #allocation1 [shape = 'u32[144,128]{1,0:T(1,128)}', space=vmem, size = 0x12000, scoped, tag = 'internal scratch']
  %s0 = inlined_call_operand.vmem [shape: f32[8,32], index: 0, kind: input, shape index: {}]
  %s1 = inlined_call_operand.vmem [shape: f32[32,8], index: 1, kind: input, shape index: {}]
  %s2 = inlined_call_operand.vmem [shape: f32[32,32], index: 2, kind: input, shape index: {}]
  %s3 = inlined_call_operand.vmem [shape: f32[32,32], index: 3, kind: input, shape index: {}]
  %s4 = inlined_call_operand.vmem [shape: f32[1,32], index: 4, kind: input, shape index: {}]
  %s5 = inlined_call_operand.vmem [shape: f32[32,32], index: 5, kind: input, shape index: {}]
  %s6 = inlined_call_operand.vmem [shape: f32[1,32], index: 6, kind: input, shape index: {}]
  %s7 = inlined_call_operand.vmem [shape: f32[32,4], index: 7, kind: input, shape index: {}]
  %s8 = inlined_call_operand.vmem [shape: f32[1,4], index: 8, kind: input, shape index: {}]
  %s9 = inlined_call_operand.vmem [shape: f32[32,32], index: 9, kind: input, shape index: {}]
  %s10 = inlined_call_operand.vmem [shape: f32[32,32], index: 10, kind: input, shape index: {}]
  %s11 = inlined_call_operand.vmem [shape: f32[1,32], index: 11, kind: input, shape index: {}]
  %s12 = inlined_call_operand.vmem [shape: f32[32,8], index: 12, kind: input, shape index: {}]
  %s13 = inlined_call_operand.vmem [shape: f32[1,8], index: 13, kind: input, shape index: {}]
  %s14 = inlined_call_operand.vmem [shape: f32[32,8], index: 14, kind: input, shape index: {}]
  %s15 = inlined_call_operand.vmem [shape: f32[1,8], index: 15, kind: input, shape index: {}]
  %s16 = inlined_call_operand.vmem [shape: f32[8,32], index: 16, kind: input, shape index: {}]
  %s17 = inlined_call_operand.vmem [shape: f32[1,32], index: 17, kind: input, shape index: {}]
  %s18 = inlined_call_operand.vmem [shape: f32[32,32], index: 18, kind: input, shape index: {}]
  %s19 = inlined_call_operand.vmem [shape: f32[1,32], index: 19, kind: input, shape index: {}]
  %s20 = inlined_call_operand.vmem [shape: f32[32,16], index: 20, kind: input, shape index: {}]
  %s21 = inlined_call_operand.vmem [shape: f32[1,16], index: 21, kind: input, shape index: {}]
  %s22 = inlined_call_operand.vmem [shape: f32[32,16], index: 22, kind: input, shape index: {}]
  %s23 = inlined_call_operand.vmem [shape: f32[1,16], index: 23, kind: input, shape index: {}]
  %s24 = inlined_call_operand.vmem [shape: f32[8,8], index: 24, kind: output, shape index: {0}]
  %s25 = inlined_call_operand.vmem [shape: f32[32,56], index: 25, kind: output, shape index: {1}]
  %26 = xla_tuple %s24, %s25
  %s27 = sld [smem:[#allocation0]]
  $region114: #{gmvae_forward_pallas.1} parent=0
    _
  %s29 = ssub.s32 1, %s27
  %s30 = scalar_select 0, %s29, %s27
  // Predicated region
  $region2: #{gmvae_forward_pallas.1} parent=0 // pred_check
    _
  $region3: #{gmvae_forward_pallas.1} parent=0 // pred_check_branch
    %32 = sbr.rel (0) target = $region5
  $region4: #{gmvae_forward_pallas.1} parent=0 // pred_region
    _
  $region5: #{gmvae_forward_pallas.1} parent=0 // pred_fallthru
    _
  // Predicated region
  $region6: #{gmvae_forward_pallas.1} parent=0 // pred_check
    _
  $region7: #{gmvae_forward_pallas.1} parent=0 // pred_check_branch
    %34 = sbr.rel (0) target = $region9
  $region8: #{gmvae_forward_pallas.1} parent=0 // pred_region
    _
  $region9: #{gmvae_forward_pallas.1} parent=0 // pred_fallthru
    _
  // Predicated region
  $region10: #{gmvae_forward_pallas.1} parent=0 // pred_check
    _
  $region11: #{gmvae_forward_pallas.1} parent=0 // pred_check_branch
    %36 = sbr.rel (0) target = $region13
  $region12: #{gmvae_forward_pallas.1} parent=0 // pred_region
    _
  $region13: #{gmvae_forward_pallas.1} parent=0 // pred_fallthru
    _
  // Predicated region
  $region14: #{gmvae_forward_pallas.1} parent=0 // pred_check
    _
  $region15: #{gmvae_forward_pallas.1} parent=0 // pred_check_branch
    %38 = sbr.rel (0) target = $region17
  $region16: #{gmvae_forward_pallas.1} parent=0 // pred_region
    _
  $region17: #{gmvae_forward_pallas.1} parent=0 // pred_fallthru
    _
  // Predicated region
  $region18: #{gmvae_forward_pallas.1} parent=0 // pred_check
    _
  $region19: #{gmvae_forward_pallas.1} parent=0 // pred_check_branch
    %40 = sbr.rel (0) target = $region21
  $region20: #{gmvae_forward_pallas.1} parent=0 // pred_region
    _
  $region21: #{gmvae_forward_pallas.1} parent=0 // pred_fallthru
    _
  // Predicated region
  $region22: #{gmvae_forward_pallas.1} parent=0 // pred_check
    _
  $region23: #{gmvae_forward_pallas.1} parent=0 // pred_check_branch
    %42 = sbr.rel (0) target = $region25
  $region24: #{gmvae_forward_pallas.1} parent=0 // pred_region
    _
  $region25: #{gmvae_forward_pallas.1} parent=0 // pred_fallthru
    _
  // Predicated region
  $region26: #{gmvae_forward_pallas.1} parent=0 // pred_check
    _
  $region27: #{gmvae_forward_pallas.1} parent=0 // pred_check_branch
    %44 = sbr.rel (0) target = $region29
  $region28: #{gmvae_forward_pallas.1} parent=0 // pred_region
    _
  $region29: #{gmvae_forward_pallas.1} parent=0 // pred_fallthru
    _
  // Predicated region
  $region30: #{gmvae_forward_pallas.1} parent=0 // pred_check
    _
  $region31: #{gmvae_forward_pallas.1} parent=0 // pred_check_branch
    %46 = sbr.rel (0) target = $region33
  $region32: #{gmvae_forward_pallas.1} parent=0 // pred_region
    _
  $region33: #{gmvae_forward_pallas.1} parent=0 // pred_fallthru
    _
  // Predicated region
  $region34: #{gmvae_forward_pallas.1} parent=0 // pred_check
    _
  $region35: #{gmvae_forward_pallas.1} parent=0 // pred_check_branch
    %48 = sbr.rel (0) target = $region37
  $region36: #{gmvae_forward_pallas.1} parent=0 // pred_region
    _
  $region37: #{gmvae_forward_pallas.1} parent=0 // pred_fallthru
    _
  // Predicated region
  $region38: #{gmvae_forward_pallas.1} parent=0 // pred_check
    _
  $region39: #{gmvae_forward_pallas.1} parent=0 // pred_check_branch
    %50 = sbr.rel (0) target = $region41
  $region40: #{gmvae_forward_pallas.1} parent=0 // pred_region
    _
  $region41: #{gmvae_forward_pallas.1} parent=0 // pred_fallthru
    _
  // Predicated region
  $region42: #{gmvae_forward_pallas.1} parent=0 // pred_check
    _
  $region43: #{gmvae_forward_pallas.1} parent=0 // pred_check_branch
    %52 = sbr.rel (0) target = $region45
  $region44: #{gmvae_forward_pallas.1} parent=0 // pred_region
    _
  $region45: #{gmvae_forward_pallas.1} parent=0 // pred_fallthru
    _
  // Predicated region
  $region46: #{gmvae_forward_pallas.1} parent=0 // pred_check
    _
  $region47: #{gmvae_forward_pallas.1} parent=0 // pred_check_branch
    %54 = sbr.rel (0) target = $region49
  $region48: #{gmvae_forward_pallas.1} parent=0 // pred_region
    _
  $region49: #{gmvae_forward_pallas.1} parent=0 // pred_fallthru
    _
  // Predicated region
  $region50: #{gmvae_forward_pallas.1} parent=0 // pred_check
    _
  $region51: #{gmvae_forward_pallas.1} parent=0 // pred_check_branch
    %56 = sbr.rel (0) target = $region53
  $region52: #{gmvae_forward_pallas.1} parent=0 // pred_region
    _
  $region53: #{gmvae_forward_pallas.1} parent=0 // pred_fallthru
    _
  // Predicated region
  $region54: #{gmvae_forward_pallas.1} parent=0 // pred_check
    _
  $region55: #{gmvae_forward_pallas.1} parent=0 // pred_check_branch
    %58 = sbr.rel (0) target = $region57
  $region56: #{gmvae_forward_pallas.1} parent=0 // pred_region
    _
  $region57: #{gmvae_forward_pallas.1} parent=0 // pred_fallthru
    _
  // Predicated region
  $region58: #{gmvae_forward_pallas.1} parent=0 // pred_check
    _
  $region59: #{gmvae_forward_pallas.1} parent=0 // pred_check_branch
    %60 = sbr.rel (0) target = $region61
  $region60: #{gmvae_forward_pallas.1} parent=0 // pred_region
    _
  $region61: #{gmvae_forward_pallas.1} parent=0 // pred_fallthru
    _
  // Predicated region
  $region62: #{gmvae_forward_pallas.1} parent=0 // pred_check
    _
  $region63: #{gmvae_forward_pallas.1} parent=0 // pred_check_branch
    %62 = sbr.rel (0) target = $region65
  $region64: #{gmvae_forward_pallas.1} parent=0 // pred_region
    _
  $region65: #{gmvae_forward_pallas.1} parent=0 // pred_fallthru
    _
  // Predicated region
  $region66: #{gmvae_forward_pallas.1} parent=0 // pred_check
    _
  $region67: #{gmvae_forward_pallas.1} parent=0 // pred_check_branch
    %64 = sbr.rel (0) target = $region69
  $region68: #{gmvae_forward_pallas.1} parent=0 // pred_region
    _
  $region69: #{gmvae_forward_pallas.1} parent=0 // pred_fallthru
    _
  // Predicated region
  $region70: #{gmvae_forward_pallas.1} parent=0 // pred_check
    _
  $region71: #{gmvae_forward_pallas.1} parent=0 // pred_check_branch
    %66 = sbr.rel (0) target = $region73
  $region72: #{gmvae_forward_pallas.1} parent=0 // pred_region
    _
  $region73: #{gmvae_forward_pallas.1} parent=0 // pred_fallthru
    _
  // Predicated region
  $region74: #{gmvae_forward_pallas.1} parent=0 // pred_check
    _
  $region75: #{gmvae_forward_pallas.1} parent=0 // pred_check_branch
    %68 = sbr.rel (0) target = $region77
  $region76: #{gmvae_forward_pallas.1} parent=0 // pred_region
    _
  $region77: #{gmvae_forward_pallas.1} parent=0 // pred_fallthru
    _
  // Predicated region
  $region78: #{gmvae_forward_pallas.1} parent=0 // pred_check
    _
  $region79: #{gmvae_forward_pallas.1} parent=0 // pred_check_branch
    %70 = sbr.rel (0) target = $region81
  $region80: #{gmvae_forward_pallas.1} parent=0 // pred_region
    _
  $region81: #{gmvae_forward_pallas.1} parent=0 // pred_fallthru
    _
  // Predicated region
  $region82: #{gmvae_forward_pallas.1} parent=0 // pred_check
    _
  $region83: #{gmvae_forward_pallas.1} parent=0 // pred_check_branch
    %72 = sbr.rel (0) target = $region85
  $region84: #{gmvae_forward_pallas.1} parent=0 // pred_region
    _
  $region85: #{gmvae_forward_pallas.1} parent=0 // pred_fallthru
    _
  // Predicated region
  $region86: #{gmvae_forward_pallas.1} parent=0 // pred_check
    _
  $region87: #{gmvae_forward_pallas.1} parent=0 // pred_check_branch
    %74 = sbr.rel (0) target = $region89
  $region88: #{gmvae_forward_pallas.1} parent=0 // pred_region
    _
  $region89: #{gmvae_forward_pallas.1} parent=0 // pred_fallthru
    _
  // Predicated region
  $region90: #{gmvae_forward_pallas.1} parent=0 // pred_check
    _
  $region91: #{gmvae_forward_pallas.1} parent=0 // pred_check_branch
    %76 = sbr.rel (0) target = $region93
  $region92: #{gmvae_forward_pallas.1} parent=0 // pred_region
    _
  $region93: #{gmvae_forward_pallas.1} parent=0 // pred_fallthru
    _
  // Predicated region
  $region94: #{gmvae_forward_pallas.1} parent=0 // pred_check
    _
  $region95: #{gmvae_forward_pallas.1} parent=0 // pred_check_branch
    %78 = sbr.rel (0) target = $region97
  $region96: #{gmvae_forward_pallas.1} parent=0 // pred_region
    _
  $region97: #{gmvae_forward_pallas.1} parent=0 // pred_fallthru
    _
  %v79 = vld [vmem:[%s0] sm:$0xff]
  %v80 = vld [vmem:[%s3] sm:$0xff]
  %v81 = vld [vmem:[%s3 + $0x8] sm:$0xff]
  %v82 = vld [vmem:[%s3 + $0x10] sm:$0xff]
  %v83 = vld [vmem:[%s3 + $0x18] sm:$0xff]
  %v84 = vld [vmem:[%s4] sm:$0x1]
  %v86 = vlaneseq
  %v87 = vshrl.u32 %v86, 7
  %v88 = vsub.s32 0, %v87
  %v89 = vrot.slane %v84, %v88
  %vm91 = vcmask 261120
  %v93 = vsel %vm91, %v79, 0
  %95 = vmatprep.subr.mxu0 0.0
  %96 = vmatpush1.msra.mxu0 %v80
  %97 = vmatprep.subr.mxu0 0.0
  %98 = vmatpush1.msra.mxu0 %v81
  %99 = vmatprep.subr.mxu0 0.0
  %100 = vmatpush1.msra.mxu0 %v82
  %101 = vmatprep.subr.mxu0 0.0
  %102 = vmatpush1.msra.mxu0 %v83
  %103 = vmatprep.subr.mxu0 0.0
  %104 = vmatpush1.msra.mxu0 0.0
  %105 = vmatprep.subr.mxu0 0.0
  %106 = vmatpush1.msra.mxu0 0.0
  %107 = vmatprep.subr.mxu0 0.0
  %108 = vmatpush1.msra.mxu0 0.0
  %109 = vmatprep.subr.mxu0 0.0
  %110 = vmatpush1.msra.mxu0 0.0
  %111 = vmatprep.subr.mxu0 0.0
  %112 = vmatpush1.msra.mxu0 0.0
  %113 = vmatprep.subr.mxu0 0.0
  %114 = vmatpush1.msra.mxu0 0.0
  %115 = vmatprep.subr.mxu0 0.0
  %116 = vmatpush1.msra.mxu0 0.0
  %117 = vmatprep.subr.mxu0 0.0
  %118 = vmatpush1.msra.mxu0 0.0
  %119 = vmatprep.subr.mxu0 0.0
  %120 = vmatpush1.msra.mxu0 0.0
  %121 = vmatprep.subr.mxu0 0.0
  %122 = vmatpush1.msra.mxu0 0.0
  %123 = vmatprep.subr.mxu0 0.0
  %124 = vmatpush1.msra.mxu0 0.0
  %125 = vmatprep.subr.mxu0 0.0
  %126 = vmatpush1.msra.mxu0 0.0
  %127 = vmatprep.subr.mxu0 0.0
  %128 = vmatpush1.msra.mxu0 0.0
  %129 = vmatprep.subr.mxu0 0.0
  %130 = vmatpush1.msra.mxu0 0.0
  %131 = vmatprep.subr.mxu0 0.0
  %132 = vmatpush1.msra.mxu0 0.0
  %133 = vmatprep.subr.mxu0 0.0
  %134 = vmatpush1.msra.mxu0 0.0
  %135 = vmatprep.subr.mxu0 0.0
  %136 = vmatpush1.msra.mxu0 0.0
  %137 = vmatprep.subr.mxu0 0.0
  %138 = vmatpush1.msra.mxu0 0.0
  %139 = vmatprep.subr.mxu0 0.0
  %140 = vmatpush1.msra.mxu0 0.0
  %141 = vmatprep.subr.mxu0 0.0
  %142 = vmatpush1.msra.mxu0 0.0
  %143 = vmatprep.subr.mxu0 0.0
  %144 = vmatpush1.msra.mxu0 0.0
  %145 = vmatprep.subr.mxu0 0.0
  %146 = vmatpush1.msra.mxu0 0.0
  %147 = vmatprep.subr.mxu0 0.0
  %148 = vmatpush1.msra.mxu0 0.0
  %149 = vmatprep.subr.mxu0 0.0
  %150 = vmatpush1.msra.mxu0 0.0
  %151 = vmatprep.subr.mxu0 0.0
  %152 = vmatpush1.msra.mxu0 0.0
  %153 = vmatprep.subr.mxu0 0.0
  %154 = vmatpush1.msra.mxu0 0.0
  %155 = vmatprep.subr.mxu0 0.0
  %156 = vmatpush1.msra.mxu0 0.0
  %157 = vmatprep.subr.mxu0 0.0
  %158 = vmatpush1.msra.mxu0 0.0
  %159 = vmatprep.mubr.f32.mxu0 0.0
  %160 = vmatmul.mubr.f32.gmra.mrb[0].mxu0 %v93
  %v161 = vpop.f32.mrb[0].mxu0
  %v162 = vadd.f32 %v89, %v161
  %v163 = vpop.f32.mrb[0].mxu0
  %164 = vdwg.mxu0
  %v165 = vmax.f32 %v162, 0.0
  %v166 = vld [vmem:[%s5] sm:$0xff]
  %v167 = vld [vmem:[%s5 + $0x8] sm:$0xff]
  %v168 = vld [vmem:[%s5 + $0x10] sm:$0xff]
  %v169 = vld [vmem:[%s5 + $0x18] sm:$0xff]
  %v170 = vld [vmem:[%s6] sm:$0x1]
  %v172 = vlaneseq
  %v173 = vshrl.u32 %v172, 7
  %v174 = vsub.s32 0, %v173
  %v175 = vrot.slane %v170, %v174
  %v178 = vsel %vm91, %v165, 0
  %180 = vmatprep.subr.mxu0 0.0
  %181 = vmatpush1.msra.mxu0 %v166
  %182 = vmatprep.subr.mxu0 0.0
  %183 = vmatpush1.msra.mxu0 %v167
  %184 = vmatprep.subr.mxu0 0.0
  %185 = vmatpush1.msra.mxu0 %v168
  %186 = vmatprep.subr.mxu0 0.0
  %187 = vmatpush1.msra.mxu0 %v169
  %188 = vmatprep.subr.mxu0 0.0
  %189 = vmatpush1.msra.mxu0 0.0
  %190 = vmatprep.subr.mxu0 0.0
  %191 = vmatpush1.msra.mxu0 0.0
  %192 = vmatprep.subr.mxu0 0.0
  %193 = vmatpush1.msra.mxu0 0.0
  %194 = vmatprep.subr.mxu0 0.0
  %195 = vmatpush1.msra.mxu0 0.0
  %196 = vmatprep.subr.mxu0 0.0
  %197 = vmatpush1.msra.mxu0 0.0
  %198 = vmatprep.subr.mxu0 0.0
  %199 = vmatpush1.msra.mxu0 0.0
  %200 = vmatprep.subr.mxu0 0.0
  %201 = vmatpush1.msra.mxu0 0.0
  %202 = vmatprep.subr.mxu0 0.0
  %203 = vmatpush1.msra.mxu0 0.0
  %204 = vmatprep.subr.mxu0 0.0
  %205 = vmatpush1.msra.mxu0 0.0
  %206 = vmatprep.subr.mxu0 0.0
  %207 = vmatpush1.msra.mxu0 0.0
  %208 = vmatprep.subr.mxu0 0.0
  %209 = vmatpush1.msra.mxu0 0.0
  %210 = vmatprep.subr.mxu0 0.0
  %211 = vmatpush1.msra.mxu0 0.0
  %212 = vmatprep.subr.mxu0 0.0
  %213 = vmatpush1.msra.mxu0 0.0
  %214 = vmatprep.subr.mxu0 0.0
  %215 = vmatpush1.msra.mxu0 0.0
  %216 = vmatprep.subr.mxu0 0.0
  %217 = vmatpush1.msra.mxu0 0.0
  %218 = vmatprep.subr.mxu0 0.0
  %219 = vmatpush1.msra.mxu0 0.0
  %220 = vmatprep.subr.mxu0 0.0
  %221 = vmatpush1.msra.mxu0 0.0
  %222 = vmatprep.subr.mxu0 0.0
  %223 = vmatpush1.msra.mxu0 0.0
  %224 = vmatprep.subr.mxu0 0.0
  %225 = vmatpush1.msra.mxu0 0.0
  %226 = vmatprep.subr.mxu0 0.0
  %227 = vmatpush1.msra.mxu0 0.0
  %228 = vmatprep.subr.mxu0 0.0
  %229 = vmatpush1.msra.mxu0 0.0
  %230 = vmatprep.subr.mxu0 0.0
  %231 = vmatpush1.msra.mxu0 0.0
  %232 = vmatprep.subr.mxu0 0.0
  %233 = vmatpush1.msra.mxu0 0.0
  %234 = vmatprep.subr.mxu0 0.0
  %235 = vmatpush1.msra.mxu0 0.0
  %236 = vmatprep.subr.mxu0 0.0
  %237 = vmatpush1.msra.mxu0 0.0
  %238 = vmatprep.subr.mxu0 0.0
  %239 = vmatpush1.msra.mxu0 0.0
  %240 = vmatprep.subr.mxu0 0.0
  %241 = vmatpush1.msra.mxu0 0.0
  %242 = vmatprep.subr.mxu0 0.0
  %243 = vmatpush1.msra.mxu0 0.0
  %244 = vmatprep.mubr.f32.mxu0 0.0
  %245 = vmatmul.mubr.f32.gmra.mrb[0].mxu0 %v178
  %v246 = vpop.f32.mrb[0].mxu0
  %v247 = vadd.f32 %v175, %v246
  %v248 = vpop.f32.mrb[0].mxu0
  %249 = vdwg.mxu0
  %v250 = vmax.f32 %v247, 0.0
  %v251 = vld [vmem:[%s7] sm:$0xff]
  %v252 = vld [vmem:[%s7 + $0x8] sm:$0xff]
  %v253 = vld [vmem:[%s7 + $0x10] sm:$0xff]
  %v254 = vld [vmem:[%s7 + $0x18] sm:$0xff]
  %v255 = vld [vmem:[%s8] sm:$0x1]
  %v257 = vlaneseq
  %v258 = vshrl.u32 %v257, 7
  %v259 = vsub.s32 0, %v258
  %v260 = vrot.slane %v255, %v259
  %v263 = vsel %vm91, %v250, 0
  %265 = vmatprep.subr.mxu0 0.0
  %266 = vmatpush1.msra.mxu0 %v251
  %267 = vmatprep.subr.mxu0 0.0
  %268 = vmatpush1.msra.mxu0 %v252
  %269 = vmatprep.subr.mxu0 0.0
  %270 = vmatpush1.msra.mxu0 %v253
  %271 = vmatprep.subr.mxu0 0.0
  %272 = vmatpush1.msra.mxu0 %v254
  %273 = vmatprep.subr.mxu0 0.0
  %274 = vmatpush1.msra.mxu0 0.0
  %275 = vmatprep.subr.mxu0 0.0
  %276 = vmatpush1.msra.mxu0 0.0
  %277 = vmatprep.subr.mxu0 0.0
  %278 = vmatpush1.msra.mxu0 0.0
  %279 = vmatprep.subr.mxu0 0.0
  %280 = vmatpush1.msra.mxu0 0.0
  %281 = vmatprep.subr.mxu0 0.0
  %282 = vmatpush1.msra.mxu0 0.0
  %283 = vmatprep.subr.mxu0 0.0
  %284 = vmatpush1.msra.mxu0 0.0
  %285 = vmatprep.subr.mxu0 0.0
  %286 = vmatpush1.msra.mxu0 0.0
  %287 = vmatprep.subr.mxu0 0.0
  %288 = vmatpush1.msra.mxu0 0.0
  %289 = vmatprep.subr.mxu0 0.0
  %290 = vmatpush1.msra.mxu0 0.0
  %291 = vmatprep.subr.mxu0 0.0
  %292 = vmatpush1.msra.mxu0 0.0
  %293 = vmatprep.subr.mxu0 0.0
  %294 = vmatpush1.msra.mxu0 0.0
  %295 = vmatprep.subr.mxu0 0.0
  %296 = vmatpush1.msra.mxu0 0.0
  %297 = vmatprep.subr.mxu0 0.0
  %298 = vmatpush1.msra.mxu0 0.0
  %299 = vmatprep.subr.mxu0 0.0
  %300 = vmatpush1.msra.mxu0 0.0
  %301 = vmatprep.subr.mxu0 0.0
  %302 = vmatpush1.msra.mxu0 0.0
  %303 = vmatprep.subr.mxu0 0.0
  %304 = vmatpush1.msra.mxu0 0.0
  %305 = vmatprep.subr.mxu0 0.0
  %306 = vmatpush1.msra.mxu0 0.0
  %307 = vmatprep.subr.mxu0 0.0
  %308 = vmatpush1.msra.mxu0 0.0
  %309 = vmatprep.subr.mxu0 0.0
  %310 = vmatpush1.msra.mxu0 0.0
  %311 = vmatprep.subr.mxu0 0.0
  %312 = vmatpush1.msra.mxu0 0.0
  %313 = vmatprep.subr.mxu0 0.0
  %314 = vmatpush1.msra.mxu0 0.0
  %315 = vmatprep.subr.mxu0 0.0
  %316 = vmatpush1.msra.mxu0 0.0
  %317 = vmatprep.subr.mxu0 0.0
  %318 = vmatpush1.msra.mxu0 0.0
  %319 = vmatprep.subr.mxu0 0.0
  %320 = vmatpush1.msra.mxu0 0.0
  %321 = vmatprep.subr.mxu0 0.0
  %322 = vmatpush1.msra.mxu0 0.0
  %323 = vmatprep.subr.mxu0 0.0
  %324 = vmatpush1.msra.mxu0 0.0
  %325 = vmatprep.subr.mxu0 0.0
  %326 = vmatpush1.msra.mxu0 0.0
  %327 = vmatprep.subr.mxu0 0.0
  %328 = vmatpush1.msra.mxu0 0.0
  %329 = vmatprep.mubr.f32.mxu0 0.0
  %330 = vmatmul.mubr.f32.gmra.mrb[0].mxu0 %v263
  %v331 = vpop.f32.mrb[0].mxu0
  %v332 = vadd.f32 %v260, %v331
  %v333 = vpop.f32.mrb[0].mxu0
  %334 = vdwg.mxu0
  %vm335 = vcmask 31744
  %v336 = vsel %vm335, %v332, -inf
  %337 = vmax.xlane.f32.xlu0 %v336
  %v338 = vpop.xlane.xlu0 %337
  %v339 = vsub.f32 %v332, %v338
  %v340 = vmul.f32 %v339, 1.442695
  %v341 = vpow.pop %v340
  %v342 = vsel %vm335, %v341, 0.0
  %343 = vadd.xlane.f32.xlu0 %v342
  %v344 = vpop.xlane.xlu0 %343
  %v345 = vrcp.pop %v344
  %v346 = vmul.f32 %v341, %v345
  %348 = vrot.lane.b32.xlu0 %v346, 4
  %v349 = vpop.permute.xlu0 %348
  %v351 = vsel %vm335, %v332, %v349
  %vm352 = vcmask 64512
  %353 = vst.msk [vmem:[%s24] sm:$0xff] %vm352, %v351
  %v354 = vld [vmem:[%s9] sm:$0xff]
  %v355 = vld [vmem:[%s9 + $0x8] sm:$0xff]
  %v356 = vld [vmem:[%s9 + $0x10] sm:$0xff]
  %v357 = vld [vmem:[%s9 + $0x18] sm:$0xff]
  %358 = vmatprep.subr.mxu0 0.0
  %359 = vmatpush1.msra.mxu0 %v354
  %360 = vmatprep.subr.mxu0 0.0
  %361 = vmatpush1.msra.mxu0 %v355
  %362 = vmatprep.subr.mxu0 0.0
  %363 = vmatpush1.msra.mxu0 %v356
  %364 = vmatprep.subr.mxu0 0.0
  %365 = vmatpush1.msra.mxu0 %v357
  %366 = vmatprep.subr.mxu0 0.0
  %367 = vmatpush1.msra.mxu0 0.0
  %368 = vmatprep.subr.mxu0 0.0
  %369 = vmatpush1.msra.mxu0 0.0
  %370 = vmatprep.subr.mxu0 0.0
  %371 = vmatpush1.msra.mxu0 0.0
  %372 = vmatprep.subr.mxu0 0.0
  %373 = vmatpush1.msra.mxu0 0.0
  %374 = vmatprep.subr.mxu0 0.0
  %375 = vmatpush1.msra.mxu0 0.0
  %376 = vmatprep.subr.mxu0 0.0
  %377 = vmatpush1.msra.mxu0 0.0
  %378 = vmatprep.subr.mxu0 0.0
  %379 = vmatpush1.msra.mxu0 0.0
  %380 = vmatprep.subr.mxu0 0.0
  %381 = vmatpush1.msra.mxu0 0.0
  %382 = vmatprep.subr.mxu0 0.0
  %383 = vmatpush1.msra.mxu0 0.0
  %384 = vmatprep.subr.mxu0 0.0
  %385 = vmatpush1.msra.mxu0 0.0
  %386 = vmatprep.subr.mxu0 0.0
  %387 = vmatpush1.msra.mxu0 0.0
  %388 = vmatprep.subr.mxu0 0.0
  %389 = vmatpush1.msra.mxu0 0.0
  %390 = vmatprep.subr.mxu0 0.0
  %391 = vmatpush1.msra.mxu0 0.0
  %392 = vmatprep.subr.mxu0 0.0
  %393 = vmatpush1.msra.mxu0 0.0
  %394 = vmatprep.subr.mxu0 0.0
  %395 = vmatpush1.msra.mxu0 0.0
  %396 = vmatprep.subr.mxu0 0.0
  %397 = vmatpush1.msra.mxu0 0.0
  %398 = vmatprep.subr.mxu0 0.0
  %399 = vmatpush1.msra.mxu0 0.0
  %400 = vmatprep.subr.mxu0 0.0
  %401 = vmatpush1.msra.mxu0 0.0
  %402 = vmatprep.subr.mxu0 0.0
  %403 = vmatpush1.msra.mxu0 0.0
  %404 = vmatprep.subr.mxu0 0.0
  %405 = vmatpush1.msra.mxu0 0.0
  %406 = vmatprep.subr.mxu0 0.0
  %407 = vmatpush1.msra.mxu0 0.0
  %408 = vmatprep.subr.mxu0 0.0
  %409 = vmatpush1.msra.mxu0 0.0
  %410 = vmatprep.subr.mxu0 0.0
  %411 = vmatpush1.msra.mxu0 0.0
  %412 = vmatprep.subr.mxu0 0.0
  %413 = vmatpush1.msra.mxu0 0.0
  %414 = vmatprep.subr.mxu0 0.0
  %415 = vmatpush1.msra.mxu0 0.0
  %416 = vmatprep.subr.mxu0 0.0
  %417 = vmatpush1.msra.mxu0 0.0
  %418 = vmatprep.subr.mxu0 0.0
  %419 = vmatpush1.msra.mxu0 0.0
  %420 = vmatprep.subr.mxu0 0.0
  %421 = vmatpush1.msra.mxu0 0.0
  %422 = vmatprep.mubr.f32.mxu0 0.0
  %423 = vmatmul.mubr.f32.gmra.mrb[0].mxu0 %v93
  %v424 = vpop.f32.mrb[0].mxu0
  %v425 = vadd.f32 0.0, %v424
  %v426 = vpop.f32.mrb[0].mxu0
  %427 = vdwg.mxu0
  %v428 = vld [vmem:[%s2] sm:$0xff]
  %v429 = vld [vmem:[%s2 + $0x8] sm:$0xff]
  %v430 = vld [vmem:[%s2 + $0x10] sm:$0xff]
  %v431 = vld [vmem:[%s2 + $0x18] sm:$0xff]
  %v432 = vadd.f32 %v425, %v428
  %v433 = vadd.f32 %v425, %v429
  %v434 = vadd.f32 %v425, %v430
  %v435 = vadd.f32 %v425, %v431
  %v436 = vmax.f32 %v432, 0.0
  %v437 = vmax.f32 %v433, 0.0
  %v438 = vmax.f32 %v434, 0.0
  %v439 = vmax.f32 %v435, 0.0
  %v440 = vld [vmem:[%s10] sm:$0xff]
  %v441 = vld [vmem:[%s10 + $0x8] sm:$0xff]
  %v442 = vld [vmem:[%s10 + $0x10] sm:$0xff]
  %v443 = vld [vmem:[%s10 + $0x18] sm:$0xff]
  %v444 = vld [vmem:[%s11] sm:$0x1]
  %v446 = vlaneseq
  %v447 = vshrl.u32 %v446, 7
  %v448 = vsub.s32 0, %v447
  %v449 = vrot.slane %v444, %v448
  %v452 = vsel %vm91, %v436, 0
  %v455 = vsel %vm91, %v437, 0
  %v458 = vsel %vm91, %v438, 0
  %v461 = vsel %vm91, %v439, 0
  %463 = vmatprep.subr.mxu0 0.0
  %464 = vmatpush1.msra.mxu0 %v440
  %465 = vmatprep.subr.mxu0 0.0
  %466 = vmatpush1.msra.mxu0 %v441
  %467 = vmatprep.subr.mxu0 0.0
  %468 = vmatpush1.msra.mxu0 %v442
  %469 = vmatprep.subr.mxu0 0.0
  %470 = vmatpush1.msra.mxu0 %v443
  %471 = vmatprep.subr.mxu0 0.0
  %472 = vmatpush1.msra.mxu0 0.0
  %473 = vmatprep.subr.mxu0 0.0
  %474 = vmatpush1.msra.mxu0 0.0
  %475 = vmatprep.subr.mxu0 0.0
  %476 = vmatpush1.msra.mxu0 0.0
  %477 = vmatprep.subr.mxu0 0.0
  %478 = vmatpush1.msra.mxu0 0.0
  %479 = vmatprep.subr.mxu0 0.0
  %480 = vmatpush1.msra.mxu0 0.0
  %481 = vmatprep.subr.mxu0 0.0
  %482 = vmatpush1.msra.mxu0 0.0
  %483 = vmatprep.subr.mxu0 0.0
  %484 = vmatpush1.msra.mxu0 0.0
  %485 = vmatprep.subr.mxu0 0.0
  %486 = vmatpush1.msra.mxu0 0.0
  %487 = vmatprep.subr.mxu0 0.0
  %488 = vmatpush1.msra.mxu0 0.0
  %489 = vmatprep.subr.mxu0 0.0
  %490 = vmatpush1.msra.mxu0 0.0
  %491 = vmatprep.subr.mxu0 0.0
  %492 = vmatpush1.msra.mxu0 0.0
  %493 = vmatprep.subr.mxu0 0.0
  %494 = vmatpush1.msra.mxu0 0.0
  %495 = vmatprep.subr.mxu0 0.0
  %496 = vmatpush1.msra.mxu0 0.0
  %497 = vmatprep.subr.mxu0 0.0
  %498 = vmatpush1.msra.mxu0 0.0
  %499 = vmatprep.subr.mxu0 0.0
  %500 = vmatpush1.msra.mxu0 0.0
  %501 = vmatprep.subr.mxu0 0.0
  %502 = vmatpush1.msra.mxu0 0.0
  %503 = vmatprep.subr.mxu0 0.0
  %504 = vmatpush1.msra.mxu0 0.0
  %505 = vmatprep.subr.mxu0 0.0
  %506 = vmatpush1.msra.mxu0 0.0
  %507 = vmatprep.subr.mxu0 0.0
  %508 = vmatpush1.msra.mxu0 0.0
  %509 = vmatprep.subr.mxu0 0.0
  %510 = vmatpush1.msra.mxu0 0.0
  %511 = vmatprep.subr.mxu0 0.0
  %512 = vmatpush1.msra.mxu0 0.0
  %513 = vmatprep.subr.mxu0 0.0
  %514 = vmatpush1.msra.mxu0 0.0
  %515 = vmatprep.subr.mxu0 0.0
  %516 = vmatpush1.msra.mxu0 0.0
  %517 = vmatprep.subr.mxu0 0.0
  %518 = vmatpush1.msra.mxu0 0.0
  %519 = vmatprep.subr.mxu0 0.0
  %520 = vmatpush1.msra.mxu0 0.0
  %521 = vmatprep.subr.mxu0 0.0
  %522 = vmatpush1.msra.mxu0 0.0
  %523 = vmatprep.subr.mxu0 0.0
  %524 = vmatpush1.msra.mxu0 0.0
  %525 = vmatprep.subr.mxu0 0.0
  %526 = vmatpush1.msra.mxu0 0.0
  %527 = vmatprep.mubr.f32.mxu0 0.0
  %528 = vmatmul.mubr.f32.gmra.mrb[0].mxu0 %v452
  %v529 = vpop.f32.mrb[0].mxu0
  %v530 = vadd.f32 %v449, %v529
  %v531 = vpop.f32.mrb[0].mxu0
  %532 = vmatprep.mubr.f32.mxu0 0.0
  %533 = vmatmul.mubr.f32.gmra.mrb[0].mxu0 %v455
  %v534 = vpop.f32.mrb[0].mxu0
  %v535 = vadd.f32 %v449, %v534
  %v536 = vpop.f32.mrb[0].mxu0
  %537 = vmatprep.mubr.f32.mxu0 0.0
  %538 = vmatmul.mubr.f32.gmra.mrb[0].mxu0 %v458
  %v539 = vpop.f32.mrb[0].mxu0
  %v540 = vadd.f32 %v449, %v539
  %v541 = vpop.f32.mrb[0].mxu0
  %542 = vmatprep.mubr.f32.mxu0 0.0
  %543 = vmatmul.mubr.f32.gmra.mrb[0].mxu0 %v461
  %v544 = vpop.f32.mrb[0].mxu0
  %v545 = vadd.f32 %v449, %v544
  %v546 = vpop.f32.mrb[0].mxu0
  %547 = vdwg.mxu0
  %v548 = vmax.f32 %v530, 0.0
  %v549 = vmax.f32 %v535, 0.0
  %v550 = vmax.f32 %v540, 0.0
  %v551 = vmax.f32 %v545, 0.0
  %v552 = vld [vmem:[%s12] sm:$0xff]
  %v553 = vld [vmem:[%s12 + $0x8] sm:$0xff]
  %v554 = vld [vmem:[%s12 + $0x10] sm:$0xff]
  %v555 = vld [vmem:[%s12 + $0x18] sm:$0xff]
  %v556 = vld [vmem:[%s13] sm:$0x1]
  %v558 = vlaneseq
  %v559 = vshrl.u32 %v558, 7
  %v560 = vsub.s32 0, %v559
  %v561 = vrot.slane %v556, %v560
  %v564 = vsel %vm91, %v548, 0
  %v567 = vsel %vm91, %v549, 0
  %v570 = vsel %vm91, %v550, 0
  %v573 = vsel %vm91, %v551, 0
  %575 = vmatprep.subr.mxu0 0.0
  %576 = vmatpush1.msra.mxu0 %v552
  %577 = vmatprep.subr.mxu0 0.0
  %578 = vmatpush1.msra.mxu0 %v553
  %579 = vmatprep.subr.mxu0 0.0
  %580 = vmatpush1.msra.mxu0 %v554
  %581 = vmatprep.subr.mxu0 0.0
  %582 = vmatpush1.msra.mxu0 %v555
  %583 = vmatprep.subr.mxu0 0.0
  %584 = vmatpush1.msra.mxu0 0.0
  %585 = vmatprep.subr.mxu0 0.0
  %586 = vmatpush1.msra.mxu0 0.0
  %587 = vmatprep.subr.mxu0 0.0
  %588 = vmatpush1.msra.mxu0 0.0
  %589 = vmatprep.subr.mxu0 0.0
  %590 = vmatpush1.msra.mxu0 0.0
  %591 = vmatprep.subr.mxu0 0.0
  %592 = vmatpush1.msra.mxu0 0.0
  %593 = vmatprep.subr.mxu0 0.0
  %594 = vmatpush1.msra.mxu0 0.0
  %595 = vmatprep.subr.mxu0 0.0
  %596 = vmatpush1.msra.mxu0 0.0
  %597 = vmatprep.subr.mxu0 0.0
  %598 = vmatpush1.msra.mxu0 0.0
  %599 = vmatprep.subr.mxu0 0.0
  %600 = vmatpush1.msra.mxu0 0.0
  %601 = vmatprep.subr.mxu0 0.0
  %602 = vmatpush1.msra.mxu0 0.0
  %603 = vmatprep.subr.mxu0 0.0
  %604 = vmatpush1.msra.mxu0 0.0
  %605 = vmatprep.subr.mxu0 0.0
  %606 = vmatpush1.msra.mxu0 0.0
  %607 = vmatprep.subr.mxu0 0.0
  %608 = vmatpush1.msra.mxu0 0.0
  %609 = vmatprep.subr.mxu0 0.0
  %610 = vmatpush1.msra.mxu0 0.0
  %611 = vmatprep.subr.mxu0 0.0
  %612 = vmatpush1.msra.mxu0 0.0
  %613 = vmatprep.subr.mxu0 0.0
  %614 = vmatpush1.msra.mxu0 0.0
  %615 = vmatprep.subr.mxu0 0.0
  %616 = vmatpush1.msra.mxu0 0.0
  %617 = vmatprep.subr.mxu0 0.0
  %618 = vmatpush1.msra.mxu0 0.0
  %619 = vmatprep.subr.mxu0 0.0
  %620 = vmatpush1.msra.mxu0 0.0
  %621 = vmatprep.subr.mxu0 0.0
  %622 = vmatpush1.msra.mxu0 0.0
  %623 = vmatprep.subr.mxu0 0.0
  %624 = vmatpush1.msra.mxu0 0.0
  %625 = vmatprep.subr.mxu0 0.0
  %626 = vmatpush1.msra.mxu0 0.0
  %627 = vmatprep.subr.mxu0 0.0
  %628 = vmatpush1.msra.mxu0 0.0
  %629 = vmatprep.subr.mxu0 0.0
  %630 = vmatpush1.msra.mxu0 0.0
  %631 = vmatprep.subr.mxu0 0.0
  %632 = vmatpush1.msra.mxu0 0.0
  %633 = vmatprep.subr.mxu0 0.0
  %634 = vmatpush1.msra.mxu0 0.0
  %635 = vmatprep.subr.mxu0 0.0
  %636 = vmatpush1.msra.mxu0 0.0
  %637 = vmatprep.subr.mxu0 0.0
  %638 = vmatpush1.msra.mxu0 0.0
  %639 = vmatprep.mubr.f32.mxu0 0.0
  %640 = vmatmul.mubr.f32.gmra.mrb[0].mxu0 %v564
  %v641 = vpop.f32.mrb[0].mxu0
  %v642 = vadd.f32 %v561, %v641
  %v643 = vpop.f32.mrb[0].mxu0
  %644 = vmatprep.mubr.f32.mxu0 0.0
  %645 = vmatmul.mubr.f32.gmra.mrb[0].mxu0 %v567
  %v646 = vpop.f32.mrb[0].mxu0
  %v647 = vadd.f32 %v561, %v646
  %v648 = vpop.f32.mrb[0].mxu0
  %649 = vmatprep.mubr.f32.mxu0 0.0
  %650 = vmatmul.mubr.f32.gmra.mrb[0].mxu0 %v570
  %v651 = vpop.f32.mrb[0].mxu0
  %v652 = vadd.f32 %v561, %v651
  %v653 = vpop.f32.mrb[0].mxu0
  %654 = vmatprep.mubr.f32.mxu0 0.0
  %655 = vmatmul.mubr.f32.gmra.mrb[0].mxu0 %v573
  %v656 = vpop.f32.mrb[0].mxu0
  %v657 = vadd.f32 %v561, %v656
  %v658 = vpop.f32.mrb[0].mxu0
  %659 = vdwg.mxu0
  %v660 = vld [vmem:[%s14] sm:$0xff]
  %v661 = vld [vmem:[%s14 + $0x8] sm:$0xff]
  %v662 = vld [vmem:[%s14 + $0x10] sm:$0xff]
  %v663 = vld [vmem:[%s14 + $0x18] sm:$0xff]
  %v664 = vld [vmem:[%s15] sm:$0x1]
  %v666 = vlaneseq
  %v667 = vshrl.u32 %v666, 7
  %v668 = vsub.s32 0, %v667
  %v669 = vrot.slane %v664, %v668
  %671 = vmatprep.subr.mxu0 0.0
  %672 = vmatpush1.msra.mxu0 %v660
  %673 = vmatprep.subr.mxu0 0.0
  %674 = vmatpush1.msra.mxu0 %v661
  %675 = vmatprep.subr.mxu0 0.0
  %676 = vmatpush1.msra.mxu0 %v662
  %677 = vmatprep.subr.mxu0 0.0
  %678 = vmatpush1.msra.mxu0 %v663
  %679 = vmatprep.subr.mxu0 0.0
  %680 = vmatpush1.msra.mxu0 0.0
  %681 = vmatprep.subr.mxu0 0.0
  %682 = vmatpush1.msra.mxu0 0.0
  %683 = vmatprep.subr.mxu0 0.0
  %684 = vmatpush1.msra.mxu0 0.0
  %685 = vmatprep.subr.mxu0 0.0
  %686 = vmatpush1.msra.mxu0 0.0
  %687 = vmatprep.subr.mxu0 0.0
  %688 = vmatpush1.msra.mxu0 0.0
  %689 = vmatprep.subr.mxu0 0.0
  %690 = vmatpush1.msra.mxu0 0.0
  %691 = vmatprep.subr.mxu0 0.0
  %692 = vmatpush1.msra.mxu0 0.0
  %693 = vmatprep.subr.mxu0 0.0
  %694 = vmatpush1.msra.mxu0 0.0
  %695 = vmatprep.subr.mxu0 0.0
  %696 = vmatpush1.msra.mxu0 0.0
  %697 = vmatprep.subr.mxu0 0.0
  %698 = vmatpush1.msra.mxu0 0.0
  %699 = vmatprep.subr.mxu0 0.0
  %700 = vmatpush1.msra.mxu0 0.0
  %701 = vmatprep.subr.mxu0 0.0
  %702 = vmatpush1.msra.mxu0 0.0
  %703 = vmatprep.subr.mxu0 0.0
  %704 = vmatpush1.msra.mxu0 0.0
  %705 = vmatprep.subr.mxu0 0.0
  %706 = vmatpush1.msra.mxu0 0.0
  %707 = vmatprep.subr.mxu0 0.0
  %708 = vmatpush1.msra.mxu0 0.0
  %709 = vmatprep.subr.mxu0 0.0
  %710 = vmatpush1.msra.mxu0 0.0
  %711 = vmatprep.subr.mxu0 0.0
  %712 = vmatpush1.msra.mxu0 0.0
  %713 = vmatprep.subr.mxu0 0.0
  %714 = vmatpush1.msra.mxu0 0.0
  %715 = vmatprep.subr.mxu0 0.0
  %716 = vmatpush1.msra.mxu0 0.0
  %717 = vmatprep.subr.mxu0 0.0
  %718 = vmatpush1.msra.mxu0 0.0
  %719 = vmatprep.subr.mxu0 0.0
  %720 = vmatpush1.msra.mxu0 0.0
  %721 = vmatprep.subr.mxu0 0.0
  %722 = vmatpush1.msra.mxu0 0.0
  %723 = vmatprep.subr.mxu0 0.0
  %724 = vmatpush1.msra.mxu0 0.0
  %725 = vmatprep.subr.mxu0 0.0
  %726 = vmatpush1.msra.mxu0 0.0
  %727 = vmatprep.subr.mxu0 0.0
  %728 = vmatpush1.msra.mxu0 0.0
  %729 = vmatprep.subr.mxu0 0.0
  %730 = vmatpush1.msra.mxu0 0.0
  %731 = vmatprep.subr.mxu0 0.0
  %732 = vmatpush1.msra.mxu0 0.0
  %733 = vmatprep.subr.mxu0 0.0
  %734 = vmatpush1.msra.mxu0 0.0
  %735 = vmatprep.mubr.f32.mxu0 0.0
  %736 = vmatmul.mubr.f32.gmra.mrb[0].mxu0 %v564
  %v737 = vpop.f32.mrb[0].mxu0
  %v738 = vadd.f32 %v669, %v737
  %v739 = vpop.f32.mrb[0].mxu0
  %740 = vmatprep.mubr.f32.mxu0 0.0
  %741 = vmatmul.mubr.f32.gmra.mrb[0].mxu0 %v567
  %v742 = vpop.f32.mrb[0].mxu0
  %v743 = vadd.f32 %v669, %v742
  %v744 = vpop.f32.mrb[0].mxu0
  %745 = vmatprep.mubr.f32.mxu0 0.0
  %746 = vmatmul.mubr.f32.gmra.mrb[0].mxu0 %v570
  %v747 = vpop.f32.mrb[0].mxu0
  %v748 = vadd.f32 %v669, %v747
  %v749 = vpop.f32.mrb[0].mxu0
  %750 = vmatprep.mubr.f32.mxu0 0.0
  %751 = vmatmul.mubr.f32.gmra.mrb[0].mxu0 %v573
  %v752 = vpop.f32.mrb[0].mxu0
  %v753 = vadd.f32 %v669, %v752
  %v754 = vpop.f32.mrb[0].mxu0
  %755 = vdwg.mxu0
  %v756 = vmax.f32 %v738, -15.0
  %v757 = vmax.f32 %v743, -15.0
  %v758 = vmax.f32 %v748, -15.0
  %v759 = vmax.f32 %v753, -15.0
  %v760 = vmin.f32 %v756, 15.0
  %v761 = vmin.f32 %v757, 15.0
  %v762 = vmin.f32 %v758, 15.0
  %v763 = vmin.f32 %v759, 15.0
  %v764 = vld [vmem:[%s1] sm:$0xff]
  %v765 = vld [vmem:[%s1 + $0x8] sm:$0xff]
  %v766 = vld [vmem:[%s1 + $0x10] sm:$0xff]
  %v767 = vld [vmem:[%s1 + $0x18] sm:$0xff]
  %v768 = vmul.f32 %v760, 0.5
  %v769 = vmul.f32 %v761, 0.5
  %v770 = vmul.f32 %v762, 0.5
  %v771 = vmul.f32 %v763, 0.5
  %v772 = vmul.f32 %v768, 1.442695
  %v773 = vpow.pop %v772
  %v774 = vmul.f32 %v769, 1.442695
  %v775 = vpow.pop %v774
  %v776 = vmul.f32 %v770, 1.442695
  %v777 = vpow.pop %v776
  %v778 = vmul.f32 %v771, 1.442695
  %v779 = vpow.pop %v778
  %v780 = vmul.f32 %v764, %v773
  %v781 = vmul.f32 %v765, %v775
  %v782 = vmul.f32 %v766, %v777
  %v783 = vmul.f32 %v767, %v779
  %v784 = vadd.f32 %v642, %v780
  %v785 = vadd.f32 %v647, %v781
  %v786 = vadd.f32 %v652, %v782
  %v787 = vadd.f32 %v657, %v783
  %v788 = vld [vmem:[%s16] sm:$0xff]
  %v789 = vld [vmem:[%s17] sm:$0x1]
  %v791 = vlaneseq
  %v792 = vshrl.u32 %v791, 7
  %v793 = vsub.s32 0, %v792
  %v794 = vrot.slane %v789, %v793
  %v797 = vsel %vm352, %v784, 0
  %v800 = vsel %vm352, %v785, 0
  %v803 = vsel %vm352, %v786, 0
  %v806 = vsel %vm352, %v787, 0
  %808 = vmatprep.subr.mxu0 0.0
  %809 = vmatpush1.msra.mxu0 %v788
  %810 = vmatprep.subr.mxu0 0.0
  %811 = vmatpush1.msra.mxu0 0.0
  %812 = vmatprep.subr.mxu0 0.0
  %813 = vmatpush1.msra.mxu0 0.0
  %814 = vmatprep.subr.mxu0 0.0
  %815 = vmatpush1.msra.mxu0 0.0
  %816 = vmatprep.subr.mxu0 0.0
  %817 = vmatpush1.msra.mxu0 0.0
  %818 = vmatprep.subr.mxu0 0.0
  %819 = vmatpush1.msra.mxu0 0.0
  %820 = vmatprep.subr.mxu0 0.0
  %821 = vmatpush1.msra.mxu0 0.0
  %822 = vmatprep.subr.mxu0 0.0
  %823 = vmatpush1.msra.mxu0 0.0
  %824 = vmatprep.subr.mxu0 0.0
  %825 = vmatpush1.msra.mxu0 0.0
  %826 = vmatprep.subr.mxu0 0.0
  %827 = vmatpush1.msra.mxu0 0.0
  %828 = vmatprep.subr.mxu0 0.0
  %829 = vmatpush1.msra.mxu0 0.0
  %830 = vmatprep.subr.mxu0 0.0
  %831 = vmatpush1.msra.mxu0 0.0
  %832 = vmatprep.subr.mxu0 0.0
  %833 = vmatpush1.msra.mxu0 0.0
  %834 = vmatprep.subr.mxu0 0.0
  %835 = vmatpush1.msra.mxu0 0.0
  %836 = vmatprep.subr.mxu0 0.0
  %837 = vmatpush1.msra.mxu0 0.0
  %838 = vmatprep.subr.mxu0 0.0
  %839 = vmatpush1.msra.mxu0 0.0
  %840 = vmatprep.subr.mxu0 0.0
  %841 = vmatpush1.msra.mxu0 0.0
  %842 = vmatprep.subr.mxu0 0.0
  %843 = vmatpush1.msra.mxu0 0.0
  %844 = vmatprep.subr.mxu0 0.0
  %845 = vmatpush1.msra.mxu0 0.0
  %846 = vmatprep.subr.mxu0 0.0
  %847 = vmatpush1.msra.mxu0 0.0
  %848 = vmatprep.subr.mxu0 0.0
  %849 = vmatpush1.msra.mxu0 0.0
  %850 = vmatprep.subr.mxu0 0.0
  %851 = vmatpush1.msra.mxu0 0.0
  %852 = vmatprep.subr.mxu0 0.0
  %853 = vmatpush1.msra.mxu0 0.0
  %854 = vmatprep.subr.mxu0 0.0
  %855 = vmatpush1.msra.mxu0 0.0
  %856 = vmatprep.subr.mxu0 0.0
  %857 = vmatpush1.msra.mxu0 0.0
  %858 = vmatprep.subr.mxu0 0.0
  %859 = vmatpush1.msra.mxu0 0.0
  %860 = vmatprep.subr.mxu0 0.0
  %861 = vmatpush1.msra.mxu0 0.0
  %862 = vmatprep.subr.mxu0 0.0
  %863 = vmatpush1.msra.mxu0 0.0
  %864 = vmatprep.subr.mxu0 0.0
  %865 = vmatpush1.msra.mxu0 0.0
  %866 = vmatprep.subr.mxu0 0.0
  %867 = vmatpush1.msra.mxu0 0.0
  %868 = vmatprep.subr.mxu0 0.0
  %869 = vmatpush1.msra.mxu0 0.0
  %870 = vmatprep.subr.mxu0 0.0
  %871 = vmatpush1.msra.mxu0 0.0
  %872 = vmatprep.mubr.f32.mxu0 0.0
  %873 = vmatmul.mubr.f32.gmra.mrb[0].mxu0 %v797
  %v874 = vpop.f32.mrb[0].mxu0
  %v875 = vadd.f32 %v794, %v874
  %v876 = vpop.f32.mrb[0].mxu0
  %877 = vmatprep.mubr.f32.mxu0 0.0
  %878 = vmatmul.mubr.f32.gmra.mrb[0].mxu0 %v800
  %v879 = vpop.f32.mrb[0].mxu0
  %v880 = vadd.f32 %v794, %v879
  %v881 = vpop.f32.mrb[0].mxu0
  %882 = vmatprep.mubr.f32.mxu0 0.0
  %883 = vmatmul.mubr.f32.gmra.mrb[0].mxu0 %v803
  %v884 = vpop.f32.mrb[0].mxu0
  %v885 = vadd.f32 %v794, %v884
  %v886 = vpop.f32.mrb[0].mxu0
  %887 = vmatprep.mubr.f32.mxu0 0.0
  %888 = vmatmul.mubr.f32.gmra.mrb[0].mxu0 %v806
  %v889 = vpop.f32.mrb[0].mxu0
  %v890 = vadd.f32 %v794, %v889
  %v891 = vpop.f32.mrb[0].mxu0
  %892 = vdwg.mxu0
  %v893 = vmax.f32 %v875, 0.0
  %v894 = vmax.f32 %v880, 0.0
  %v895 = vmax.f32 %v885, 0.0
  %v896 = vmax.f32 %v890, 0.0
  %v897 = vld [vmem:[%s18] sm:$0xff]
  %v898 = vld [vmem:[%s18 + $0x8] sm:$0xff]
  %v899 = vld [vmem:[%s18 + $0x10] sm:$0xff]
  %v900 = vld [vmem:[%s18 + $0x18] sm:$0xff]
  %v901 = vld [vmem:[%s19] sm:$0x1]
  %v903 = vlaneseq
  %v904 = vshrl.u32 %v903, 7
  %v905 = vsub.s32 0, %v904
  %v906 = vrot.slane %v901, %v905
  %v909 = vsel %vm91, %v893, 0
  %v912 = vsel %vm91, %v894, 0
  %v915 = vsel %vm91, %v895, 0
  %v918 = vsel %vm91, %v896, 0
  %920 = vmatprep.subr.mxu0 0.0
  %921 = vmatpush1.msra.mxu0 %v897
  %922 = vmatprep.subr.mxu0 0.0
  %923 = vmatpush1.msra.mxu0 %v898
  %924 = vmatprep.subr.mxu0 0.0
  %925 = vmatpush1.msra.mxu0 %v899
  %926 = vmatprep.subr.mxu0 0.0
  %927 = vmatpush1.msra.mxu0 %v900
  %928 = vmatprep.subr.mxu0 0.0
  %929 = vmatpush1.msra.mxu0 0.0
  %930 = vmatprep.subr.mxu0 0.0
  %931 = vmatpush1.msra.mxu0 0.0
  %932 = vmatprep.subr.mxu0 0.0
  %933 = vmatpush1.msra.mxu0 0.0
  %934 = vmatprep.subr.mxu0 0.0
  %935 = vmatpush1.msra.mxu0 0.0
  %936 = vmatprep.subr.mxu0 0.0
  %937 = vmatpush1.msra.mxu0 0.0
  %938 = vmatprep.subr.mxu0 0.0
  %939 = vmatpush1.msra.mxu0 0.0
  %940 = vmatprep.subr.mxu0 0.0
  %941 = vmatpush1.msra.mxu0 0.0
  %942 = vmatprep.subr.mxu0 0.0
  %943 = vmatpush1.msra.mxu0 0.0
  %944 = vmatprep.subr.mxu0 0.0
  %945 = vmatpush1.msra.mxu0 0.0
  %946 = vmatprep.subr.mxu0 0.0
  %947 = vmatpush1.msra.mxu0 0.0
  %948 = vmatprep.subr.mxu0 0.0
  %949 = vmatpush1.msra.mxu0 0.0
  %950 = vmatprep.subr.mxu0 0.0
  %951 = vmatpush1.msra.mxu0 0.0
  %952 = vmatprep.subr.mxu0 0.0
  %953 = vmatpush1.msra.mxu0 0.0
  %954 = vmatprep.subr.mxu0 0.0
  %955 = vmatpush1.msra.mxu0 0.0
  %956 = vmatprep.subr.mxu0 0.0
  %957 = vmatpush1.msra.mxu0 0.0
  %958 = vmatprep.subr.mxu0 0.0
  %959 = vmatpush1.msra.mxu0 0.0
  %960 = vmatprep.subr.mxu0 0.0
  %961 = vmatpush1.msra.mxu0 0.0
  %962 = vmatprep.subr.mxu0 0.0
  %963 = vmatpush1.msra.mxu0 0.0
  %964 = vmatprep.subr.mxu0 0.0
  %965 = vmatpush1.msra.mxu0 0.0
  %966 = vmatprep.subr.mxu0 0.0
  %967 = vmatpush1.msra.mxu0 0.0
  %968 = vmatprep.subr.mxu0 0.0
  %969 = vmatpush1.msra.mxu0 0.0
  %970 = vmatprep.subr.mxu0 0.0
  %971 = vmatpush1.msra.mxu0 0.0
  %972 = vmatprep.subr.mxu0 0.0
  %973 = vmatpush1.msra.mxu0 0.0
  %974 = vmatprep.subr.mxu0 0.0
  %975 = vmatpush1.msra.mxu0 0.0
  %976 = vmatprep.subr.mxu0 0.0
  %977 = vmatpush1.msra.mxu0 0.0
  %978 = vmatprep.subr.mxu0 0.0
  %979 = vmatpush1.msra.mxu0 0.0
  %980 = vmatprep.subr.mxu0 0.0
  %981 = vmatpush1.msra.mxu0 0.0
  %982 = vmatprep.subr.mxu0 0.0
  %983 = vmatpush1.msra.mxu0 0.0
  %984 = vmatprep.mubr.f32.mxu0 0.0
  %985 = vmatmul.mubr.f32.gmra.mrb[0].mxu0 %v909
  %v986 = vpop.f32.mrb[0].mxu0
  %v987 = vadd.f32 %v906, %v986
  %v988 = vpop.f32.mrb[0].mxu0
  %989 = vmatprep.mubr.f32.mxu0 0.0
  %990 = vmatmul.mubr.f32.gmra.mrb[0].mxu0 %v912
  %v991 = vpop.f32.mrb[0].mxu0
  %v992 = vadd.f32 %v906, %v991
  %v993 = vpop.f32.mrb[0].mxu0
  %994 = vmatprep.mubr.f32.mxu0 0.0
  %995 = vmatmul.mubr.f32.gmra.mrb[0].mxu0 %v915
  %v996 = vpop.f32.mrb[0].mxu0
  %v997 = vadd.f32 %v906, %v996
  %v998 = vpop.f32.mrb[0].mxu0
  %999 = vmatprep.mubr.f32.mxu0 0.0
  %1000 = vmatmul.mubr.f32.gmra.mrb[0].mxu0 %v918
  %v1001 = vpop.f32.mrb[0].mxu0
  %v1002 = vadd.f32 %v906, %v1001
  %v1003 = vpop.f32.mrb[0].mxu0
  %1004 = vdwg.mxu0
  %v1005 = vmax.f32 %v987, 0.0
  %v1006 = vmax.f32 %v992, 0.0
  %v1007 = vmax.f32 %v997, 0.0
  %v1008 = vmax.f32 %v1002, 0.0
  %v1009 = vld [vmem:[%s20] sm:$0xff]
  %v1010 = vld [vmem:[%s20 + $0x8] sm:$0xff]
  %v1011 = vld [vmem:[%s20 + $0x10] sm:$0xff]
  %v1012 = vld [vmem:[%s20 + $0x18] sm:$0xff]
  %v1013 = vld [vmem:[%s21] sm:$0x1]
  %v1015 = vlaneseq
  %v1016 = vshrl.u32 %v1015, 7
  %v1017 = vsub.s32 0, %v1016
  %v1018 = vrot.slane %v1013, %v1017
  %v1021 = vsel %vm91, %v1005, 0
  %v1024 = vsel %vm91, %v1006, 0
  %v1027 = vsel %vm91, %v1007, 0
  %v1030 = vsel %vm91, %v1008, 0
  %1032 = vmatprep.subr.mxu0 0.0
  %1033 = vmatpush1.msra.mxu0 %v1009
  %1034 = vmatprep.subr.mxu0 0.0
  %1035 = vmatpush1.msra.mxu0 %v1010
  %1036 = vmatprep.subr.mxu0 0.0
  %1037 = vmatpush1.msra.mxu0 %v1011
  %1038 = vmatprep.subr.mxu0 0.0
  %1039 = vmatpush1.msra.mxu0 %v1012
  %1040 = vmatprep.subr.mxu0 0.0
  %1041 = vmatpush1.msra.mxu0 0.0
  %1042 = vmatprep.subr.mxu0 0.0
  %1043 = vmatpush1.msra.mxu0 0.0
  %1044 = vmatprep.subr.mxu0 0.0
  %1045 = vmatpush1.msra.mxu0 0.0
  %1046 = vmatprep.subr.mxu0 0.0
  %1047 = vmatpush1.msra.mxu0 0.0
  %1048 = vmatprep.subr.mxu0 0.0
  %1049 = vmatpush1.msra.mxu0 0.0
  %1050 = vmatprep.subr.mxu0 0.0
  %1051 = vmatpush1.msra.mxu0 0.0
  %1052 = vmatprep.subr.mxu0 0.0
  %1053 = vmatpush1.msra.mxu0 0.0
  %1054 = vmatprep.subr.mxu0 0.0
  %1055 = vmatpush1.msra.mxu0 0.0
  %1056 = vmatprep.subr.mxu0 0.0
  %1057 = vmatpush1.msra.mxu0 0.0
  %1058 = vmatprep.subr.mxu0 0.0
  %1059 = vmatpush1.msra.mxu0 0.0
  %1060 = vmatprep.subr.mxu0 0.0
  %1061 = vmatpush1.msra.mxu0 0.0
  %1062 = vmatprep.subr.mxu0 0.0
  %1063 = vmatpush1.msra.mxu0 0.0
  %1064 = vmatprep.subr.mxu0 0.0
  %1065 = vmatpush1.msra.mxu0 0.0
  %1066 = vmatprep.subr.mxu0 0.0
  %1067 = vmatpush1.msra.mxu0 0.0
  %1068 = vmatprep.subr.mxu0 0.0
  %1069 = vmatpush1.msra.mxu0 0.0
  %1070 = vmatprep.subr.mxu0 0.0
  %1071 = vmatpush1.msra.mxu0 0.0
  %1072 = vmatprep.subr.mxu0 0.0
  %1073 = vmatpush1.msra.mxu0 0.0
  %1074 = vmatprep.subr.mxu0 0.0
  %1075 = vmatpush1.msra.mxu0 0.0
  %1076 = vmatprep.subr.mxu0 0.0
  %1077 = vmatpush1.msra.mxu0 0.0
  %1078 = vmatprep.subr.mxu0 0.0
  %1079 = vmatpush1.msra.mxu0 0.0
  %1080 = vmatprep.subr.mxu0 0.0
  %1081 = vmatpush1.msra.mxu0 0.0
  %1082 = vmatprep.subr.mxu0 0.0
  %1083 = vmatpush1.msra.mxu0 0.0
  %1084 = vmatprep.subr.mxu0 0.0
  %1085 = vmatpush1.msra.mxu0 0.0
  %1086 = vmatprep.subr.mxu0 0.0
  %1087 = vmatpush1.msra.mxu0 0.0
  %1088 = vmatprep.subr.mxu0 0.0
  %1089 = vmatpush1.msra.mxu0 0.0
  %1090 = vmatprep.subr.mxu0 0.0
  %1091 = vmatpush1.msra.mxu0 0.0
  %1092 = vmatprep.subr.mxu0 0.0
  %1093 = vmatpush1.msra.mxu0 0.0
  %1094 = vmatprep.subr.mxu0 0.0
  %1095 = vmatpush1.msra.mxu0 0.0
  %1096 = vmatprep.mubr.f32.mxu0 0.0
  %1097 = vmatmul.mubr.f32.gmra.mrb[0].mxu0 %v1021
  %v1098 = vpop.f32.mrb[0].mxu0
  %v1099 = vadd.f32 %v1018, %v1098
  %v1100 = vpop.f32.mrb[0].mxu0
  %1101 = vmatprep.mubr.f32.mxu0 0.0
  %1102 = vmatmul.mubr.f32.gmra.mrb[0].mxu0 %v1024
  %v1103 = vpop.f32.mrb[0].mxu0
  %v1104 = vadd.f32 %v1018, %v1103
  %v1105 = vpop.f32.mrb[0].mxu0
  %1106 = vmatprep.mubr.f32.mxu0 0.0
  %1107 = vmatmul.mubr.f32.gmra.mrb[0].mxu0 %v1027
  %v1108 = vpop.f32.mrb[0].mxu0
  %v1109 = vadd.f32 %v1018, %v1108
  %v1110 = vpop.f32.mrb[0].mxu0
  %1111 = vmatprep.mubr.f32.mxu0 0.0
  %1112 = vmatmul.mubr.f32.gmra.mrb[0].mxu0 %v1030
  %v1113 = vpop.f32.mrb[0].mxu0
  %v1114 = vadd.f32 %v1018, %v1113
  %v1115 = vpop.f32.mrb[0].mxu0
  %1116 = vdwg.mxu0
  %v1117 = vld [vmem:[%s22] sm:$0xff]
  %v1118 = vld [vmem:[%s22 + $0x8] sm:$0xff]
  %v1119 = vld [vmem:[%s22 + $0x10] sm:$0xff]
  %v1120 = vld [vmem:[%s22 + $0x18] sm:$0xff]
  %v1121 = vld [vmem:[%s23] sm:$0x1]
  %v1123 = vlaneseq
  %v1124 = vshrl.u32 %v1123, 7
  %v1125 = vsub.s32 0, %v1124
  %v1126 = vrot.slane %v1121, %v1125
  %1128 = vmatprep.subr.mxu0 0.0
  %1129 = vmatpush1.msra.mxu0 %v1117
  %1130 = vmatprep.subr.mxu0 0.0
  %1131 = vmatpush1.msra.mxu0 %v1118
  %1132 = vmatprep.subr.mxu0 0.0
  %1133 = vmatpush1.msra.mxu0 %v1119
  %1134 = vmatprep.subr.mxu0 0.0
  %1135 = vmatpush1.msra.mxu0 %v1120
  %1136 = vmatprep.subr.mxu0 0.0
  %1137 = vmatpush1.msra.mxu0 0.0
  %1138 = vmatprep.subr.mxu0 0.0
  %1139 = vmatpush1.msra.mxu0 0.0
  %1140 = vmatprep.subr.mxu0 0.0
  %1141 = vmatpush1.msra.mxu0 0.0
  %1142 = vmatprep.subr.mxu0 0.0
  %1143 = vmatpush1.msra.mxu0 0.0
  %1144 = vmatprep.subr.mxu0 0.0
  %1145 = vmatpush1.msra.mxu0 0.0
  %1146 = vmatprep.subr.mxu0 0.0
  %1147 = vmatpush1.msra.mxu0 0.0
  %1148 = vmatprep.subr.mxu0 0.0
  %1149 = vmatpush1.msra.mxu0 0.0
  %1150 = vmatprep.subr.mxu0 0.0
  %1151 = vmatpush1.msra.mxu0 0.0
  %1152 = vmatprep.subr.mxu0 0.0
  %1153 = vmatpush1.msra.mxu0 0.0
  %1154 = vmatprep.subr.mxu0 0.0
  %1155 = vmatpush1.msra.mxu0 0.0
  %1156 = vmatprep.subr.mxu0 0.0
  %1157 = vmatpush1.msra.mxu0 0.0
  %1158 = vmatprep.subr.mxu0 0.0
  %1159 = vmatpush1.msra.mxu0 0.0
  %1160 = vmatprep.subr.mxu0 0.0
  %1161 = vmatpush1.msra.mxu0 0.0
  %1162 = vmatprep.subr.mxu0 0.0
  %1163 = vmatpush1.msra.mxu0 0.0
  %1164 = vmatprep.subr.mxu0 0.0
  %1165 = vmatpush1.msra.mxu0 0.0
  %1166 = vmatprep.subr.mxu0 0.0
  %1167 = vmatpush1.msra.mxu0 0.0
  %1168 = vmatprep.subr.mxu0 0.0
  %1169 = vmatpush1.msra.mxu0 0.0
  %1170 = vmatprep.subr.mxu0 0.0
  %1171 = vmatpush1.msra.mxu0 0.0
  %1172 = vmatprep.subr.mxu0 0.0
  %1173 = vmatpush1.msra.mxu0 0.0
  %1174 = vmatprep.subr.mxu0 0.0
  %1175 = vmatpush1.msra.mxu0 0.0
  %1176 = vmatprep.subr.mxu0 0.0
  %1177 = vmatpush1.msra.mxu0 0.0
  %1178 = vmatprep.subr.mxu0 0.0
  %1179 = vmatpush1.msra.mxu0 0.0
  %1180 = vmatprep.subr.mxu0 0.0
  %1181 = vmatpush1.msra.mxu0 0.0
  %1182 = vmatprep.subr.mxu0 0.0
  %1183 = vmatpush1.msra.mxu0 0.0
  %1184 = vmatprep.subr.mxu0 0.0
  %1185 = vmatpush1.msra.mxu0 0.0
  %1186 = vmatprep.subr.mxu0 0.0
  %1187 = vmatpush1.msra.mxu0 0.0
  %1188 = vmatprep.subr.mxu0 0.0
  %1189 = vmatpush1.msra.mxu0 0.0
  %1190 = vmatprep.subr.mxu0 0.0
  %1191 = vmatpush1.msra.mxu0 0.0
  %1192 = vmatprep.mubr.f32.mxu0 0.0
  %1193 = vmatmul.mubr.f32.gmra.mrb[0].mxu0 %v1021
  %v1194 = vpop.f32.mrb[0].mxu0
  %v1195 = vadd.f32 %v1126, %v1194
  %v1196 = vpop.f32.mrb[0].mxu0
  %1197 = vmatprep.mubr.f32.mxu0 0.0
  %1198 = vmatmul.mubr.f32.gmra.mrb[0].mxu0 %v1024
  %v1199 = vpop.f32.mrb[0].mxu0
  %v1200 = vadd.f32 %v1126, %v1199
  %v1201 = vpop.f32.mrb[0].mxu0
  %1202 = vmatprep.mubr.f32.mxu0 0.0
  %1203 = vmatmul.mubr.f32.gmra.mrb[0].mxu0 %v1027
  %v1204 = vpop.f32.mrb[0].mxu0
  %v1205 = vadd.f32 %v1126, %v1204
  %v1206 = vpop.f32.mrb[0].mxu0
  %1207 = vmatprep.mubr.f32.mxu0 0.0
  %1208 = vmatmul.mubr.f32.gmra.mrb[0].mxu0 %v1030
  %v1209 = vpop.f32.mrb[0].mxu0
  %v1210 = vadd.f32 %v1126, %v1209
  %v1211 = vpop.f32.mrb[0].mxu0
  %1212 = vdwg.mxu0
  %v1213 = vxor.u32 %v1195, 2147483648
  %v1214 = vxor.u32 %v1200, 2147483648
  %v1215 = vxor.u32 %v1205, 2147483648
  %v1216 = vxor.u32 %v1210, 2147483648
  %v1217 = vmul.f32 %v1213, 1.442695
  %v1218 = vpow.pop %v1217
  %v1219 = vmul.f32 %v1214, 1.442695
  %v1220 = vpow.pop %v1219
  %v1221 = vmul.f32 %v1215, 1.442695
  %v1222 = vpow.pop %v1221
  %v1223 = vmul.f32 %v1216, 1.442695
  %v1224 = vpow.pop %v1223
  %v1225 = vadd.f32 %v1218, 1.0
  %v1226 = vadd.f32 %v1220, 1.0
  %v1227 = vadd.f32 %v1222, 1.0
  %v1228 = vadd.f32 %v1224, 1.0
  %v1229 = vrcp.pop %v1225
  %v1230 = vmul.f32 1.0, %v1229
  %v1231 = vrcp.pop %v1226
  %v1232 = vmul.f32 1.0, %v1231
  %v1233 = vrcp.pop %v1227
  %v1234 = vmul.f32 1.0, %v1233
  %v1235 = vrcp.pop %v1228
  %v1236 = vmul.f32 1.0, %v1235
  %1241 = vrot.lane.b32.xlu0 %v642, 8
  %v1242 = vpop.permute.xlu0 %1241
  %1243 = vrot.lane.b32.xlu0 %v647, 8
  %v1244 = vpop.permute.xlu0 %1243
  %1245 = vrot.lane.b32.xlu0 %v652, 8
  %v1246 = vpop.permute.xlu0 %1245
  %1247 = vrot.lane.b32.xlu0 %v657, 8
  %v1248 = vpop.permute.xlu0 %1247
  %1257 = vrot.lane.b32.xlu0 %v760, 16
  %v1258 = vpop.permute.xlu0 %1257
  %1259 = vrot.lane.b32.xlu0 %v761, 16
  %v1260 = vpop.permute.xlu0 %1259
  %1261 = vrot.lane.b32.xlu0 %v762, 16
  %v1262 = vpop.permute.xlu0 %1261
  %1263 = vrot.lane.b32.xlu0 %v763, 16
  %v1264 = vpop.permute.xlu0 %1263
  %1273 = vrot.lane.b32.xlu0 %v1099, 24
  %v1274 = vpop.permute.xlu0 %1273
  %1275 = vrot.lane.b32.xlu0 %v1104, 24
  %v1276 = vpop.permute.xlu0 %1275
  %1277 = vrot.lane.b32.xlu0 %v1109, 24
  %v1278 = vpop.permute.xlu0 %1277
  %1279 = vrot.lane.b32.xlu0 %v1114, 24
  %v1280 = vpop.permute.xlu0 %1279
  %1289 = vrot.lane.b32.xlu0 %v1230, 40
  %v1290 = vpop.permute.xlu0 %1289
  %1291 = vrot.lane.b32.xlu0 %v1232, 40
  %v1292 = vpop.permute.xlu0 %1291
  %1293 = vrot.lane.b32.xlu0 %v1234, 40
  %v1294 = vpop.permute.xlu0 %1293
  %1295 = vrot.lane.b32.xlu0 %v1236, 40
  %v1296 = vpop.permute.xlu0 %1295
  %v1301 = vsel %vm352, %v784, %v1242
  %v1302 = vsel %vm352, %v785, %v1244
  %v1303 = vsel %vm352, %v786, %v1246
  %v1304 = vsel %vm352, %v787, %v1248
  %vm1305 = vcmask 130048
  %v1306 = vsel %vm1305, %v1301, %v1258
  %v1307 = vsel %vm1305, %v1302, %v1260
  %v1308 = vsel %vm1305, %v1303, %v1262
  %v1309 = vsel %vm1305, %v1304, %v1264
  %vm1310 = vcmask 195584
  %v1311 = vsel %vm1310, %v1306, %v1274
  %v1312 = vsel %vm1310, %v1307, %v1276
  %v1313 = vsel %vm1310, %v1308, %v1278
  %v1314 = vsel %vm1310, %v1309, %v1280
  %vm1315 = vcmask 326656
  %v1316 = vsel %vm1315, %v1311, %v1290
  %v1317 = vsel %vm1315, %v1312, %v1292
  %v1318 = vsel %vm1315, %v1313, %v1294
  %v1319 = vsel %vm1315, %v1314, %v1296
  %vm1320 = vcmask 457728
  %1321 = vst.msk [vmem:[%s25] sm:$0xff] %vm1320, %v1316
  %1322 = vst.msk [vmem:[%s25 + $0x8] sm:$0xff] %vm1320, %v1317
  %1323 = vst.msk [vmem:[%s25 + $0x10] sm:$0xff] %vm1320, %v1318
  %1324 = vst.msk [vmem:[%s25 + $0x18] sm:$0xff] %vm1320, %v1319
  // Predicated region
  $region98: #{gmvae_forward_pallas.1} parent=0 // pred_check
    _
  $region99: #{gmvae_forward_pallas.1} parent=0 // pred_check_branch
    %1326 = sbr.rel (0) target = $region101
  $region100: #{gmvae_forward_pallas.1} parent=0 // pred_region
    _
  $region101: #{gmvae_forward_pallas.1} parent=0 // pred_fallthru
    _
  // Predicated region
  $region102: #{gmvae_forward_pallas.1} parent=0 // pred_check
    _
  $region103: #{gmvae_forward_pallas.1} parent=0 // pred_check_branch
    %1328 = sbr.rel (0) target = $region105
  $region104: #{gmvae_forward_pallas.1} parent=0 // pred_region
    _
  $region105: #{gmvae_forward_pallas.1} parent=0 // pred_fallthru
    _
  // Predicated region
  $region106: #{gmvae_forward_pallas.1} parent=0 // pred_check
    _
  $region107: #{gmvae_forward_pallas.1} parent=0 // pred_check_branch
    %1330 = sbr.rel (0) target = $region109
  $region108: #{gmvae_forward_pallas.1} parent=0 // pred_region
    _
  $region109: #{gmvae_forward_pallas.1} parent=0 // pred_fallthru
    _
  // Predicated region
  $region110: #{gmvae_forward_pallas.1} parent=0 // pred_check
    _
  $region111: #{gmvae_forward_pallas.1} parent=0 // pred_check_branch
    %1332 = sbr.rel (0) target = $region113
  $region112: #{gmvae_forward_pallas.1} parent=0 // pred_region
    _
  $region113: #{gmvae_forward_pallas.1} parent=0 // pred_fallthru
    _

</llo_original>
